<compile_context>
chip_gen: v5e
topology: v5e:2x2
jax: 0.10.0
libtpu: 0.0.40
codegen_flags: <defaults>
</compile_context>

<pallas_src>
import functools

import jax
import jax.numpy as jnp
import numpy as np
from jax.experimental import pallas as pl
from jax.experimental.pallas import tpu as pltpu


def _sigmoid_via_tanh(x):
    # sigmoid(x) == 0.5*tanh(0.5*x)+0.5 : one EUP push instead of two (exp + recip).
    return 0.5 * jnp.tanh(0.5 * x) + 0.5


def _bilstm_kernel(rev_ref,                     # SMEM (B, T) int32 (scalar prefetch)
                   gxf_ref, gxb_ref,            # VMEM (Tc, Bc, 4H) f32 input projections
                   whf_ref, whb_ref,            # VMEM (H, 4H)      recurrent weights
                   b_tm_ref,                    # out  (Tc, Bc, H)  f32 (time-major, streamed)
                   cat_tm_ref,                  # out  (T,  Bc, 2H) f32 (time-major, resident over time axis)
                   hf_ref, cf_ref, hb_ref, cb_ref):  # VMEM (Bc, H) f32 state scratch
    bi = pl.program_id(0)                       # batch tile (parallel / megacore)
    ti = pl.program_id(1)                       # time chunk (arbitrary / sequential)
    Tc, Bc, four_h = gxf_ref.shape
    H = four_h // 4

    @pl.when(ti == 0)
    def _init_state():
        zero = jnp.zeros((Bc, H), jnp.float32)
        hf_ref[...] = zero
        cf_ref[...] = zero
        hb_ref[...] = zero
        cb_ref[...] = zero

    whf = whf_ref[...]                          # loaded once per chunk, reused every step
    whb = whb_ref[...]
    dot_dtype = whf.dtype

    h_f = hf_ref[...]
    c_f = cf_ref[...]
    h_b = hb_ref[...]
    c_b = cb_ref[...]

    def lstm_cell(gates, c_prev):
        # PyTorch gate order i, f, g, o; each slice is H wide.
        i_g = _sigmoid_via_tanh(gates[:, 0:H])
        f_g = _sigmoid_via_tanh(gates[:, H:2 * H])
        g_g = jnp.tanh(gates[:, 2 * H:3 * H])
        o_g = _sigmoid_via_tanh(gates[:, 3 * H:4 * H])
        c_new = f_g * c_prev + i_g * g_g
        h_new = o_g * jnp.tanh(c_new)
        return h_new, c_new

    # Tc is a small static chunk -> unroll; h/c stay in vregs within the chunk.
    for t in range(Tc):
        t_abs = ti * Tc + t

        gates_f = gxf_ref[t] + jnp.dot(h_f.astype(dot_dtype), whf,
                                       preferred_element_type=jnp.float32)
        h_f, c_f = lstm_cell(gates_f, c_f)

        gates_b = gxb_ref[t] + jnp.dot(h_b.astype(dot_dtype), whb,
                                       preferred_element_type=jnp.float32)
        h_b, c_b = lstm_cell(gates_b, c_b)

        # Time-major stores: one full (Bc, ...) tile per step, dynamic index only on
        # the major dim.
        b_tm_ref[t] = h_b
        cat_tm_ref[t_abs, :, 0:H] = h_f

        # reverse_padded_sequence fused as an SMEM-indexed scatter: the backward
        # hidden state lands directly in its reversed time slot of the concat output.
        for b in range(Bc):
            dest = rev_ref[bi * Bc + b, t_abs]
            cat_tm_ref[dest, b:b + 1, H:2 * H] = h_b[b:b + 1, :]

    # Carry the recurrent state to the next time chunk.
    hf_ref[...] = h_f
    cf_ref[...] = c_f
    hb_ref[...] = h_b
    cb_ref[...] = c_b


def _reverse_index(lengths, seq_len):
    """rev_idx[b, t] = len[b]-1-t for t < len[b], else t (identity on padding)."""
    t = jnp.arange(seq_len, dtype=jnp.int32)[None, :]
    L = lengths.astype(jnp.int32)[:, None]
    return jnp.where(t < L, L - 1 - t, t).astype(jnp.int32)


@functools.partial(jax.jit,
                   static_argnames=("time_chunk", "batch_chunk",
                                    "dot_dtype", "proj_precision"))
def gaz_bilstm_forward(f_inputs, b_inputs, lengths,
                       f_w_ih, f_w_hh, f_b_ih, f_b_hh,
                       b_w_ih, b_w_hh, b_b_ih, b_b_hh,
                       *, time_chunk=16, batch_chunk=8,
                       dot_dtype=jnp.float32, proj_precision="highest"):
    """Full Gaz_BiLSTM forward.  Inputs (B,T,D), lengths (B,), PyTorch weight layout."""
    B, T, D = f_inputs.shape
    H = f_w_hh.shape[1]

    prec = {"highest": jax.lax.Precision.HIGHEST,
            "default": jax.lax.Precision.DEFAULT}[proj_precision]

    # Static tile sizes.  Fall back to full extent when it does not divide evenly;
    # the batch tile must be a multiple of 8 sublanes (f32) or the full batch.
    Tc = time_chunk if (0 < time_chunk <= T and T % time_chunk == 0) else T
    if (0 < batch_chunk <= B and B % batch_chunk == 0
            and (batch_chunk % 8 == 0 or batch_chunk == B)):
        Bc = batch_chunk
    else:
        Bc = B

    # Hoisted input projections: one MXU-shaped matmul per direction, emitted
    # directly time-major in the kernel's final (i|f|g|o) column layout, so no
    # interleave / stack pass over the largest tensor.  Bias folding b_ih + b_hh.
    def input_proj(x, w_ih, bias):
        return (jnp.einsum("btd,gd->tbg",
                           x.astype(jnp.float32), w_ih.astype(jnp.float32),
                           precision=prec)
                + bias.astype(jnp.float32))

    gxf = input_proj(f_inputs, f_w_ih, f_b_ih + f_b_hh)         # (T, B, 4H)
    gxb = input_proj(b_inputs, b_w_ih, b_b_ih + b_b_hh)         # (T, B, 4H)

    # Per-direction recurrent weights (no zero-padded block-diagonal fusion),
    # cast to the recurrent-dot dtype (bf16 recommended on v6e/v7x).
    whf = jnp.transpose(f_w_hh).astype(dot_dtype)               # (H, 4H)
    whb = jnp.transpose(b_w_hh).astype(dot_dtype)               # (H, 4H)

    rev_idx = _reverse_index(lengths, T)                        # (B, T) int32 -> SMEM

    grid = (B // Bc, T // Tc)

    # VMEM budget sized to the actual working set (double-buffered gx chunks,
    # weights, streamed b_tm chunk, resident cat tile, state scratch) + headroom.
    dot_bytes = jnp.dtype(dot_dtype).itemsize
    vmem_est = (2 * 2 * Tc * Bc * 4 * H * 4          # gx_f, gx_b (double-buffered)
                + 2 * 2 * H * 4 * H * dot_bytes      # whh_f, whh_b
                + 2 * Tc * Bc * H * 4                # b_tm chunk
                + 2 * T * Bc * 2 * H * 4             # cat tile (resident per batch tile)
                + 4 * Bc * H * 4)                    # h/c scratch
    vmem_limit = min(int(vmem_est * 1.5) + (4 << 20), 64 << 20)

    b_tm, cat_tm = pl.pallas_call(
        _bilstm_kernel,
        out_shape=(
            jax.ShapeDtypeStruct((T, B, H), jnp.float32),        # backward LSTM, time-major
            jax.ShapeDtypeStruct((T, B, 2 * H), jnp.float32),    # [fwd | reversed bwd], time-major
        ),
        grid_spec=pltpu.PrefetchScalarGridSpec(
            num_scalar_prefetch=1,
            grid=grid,
            in_specs=[
                pl.BlockSpec((Tc, Bc, 4 * H), lambda bi, ti, _rev: (ti, bi, 0)),
                pl.BlockSpec((Tc, Bc, 4 * H), lambda bi, ti, _rev: (ti, bi, 0)),
                pl.BlockSpec((H, 4 * H), lambda bi, ti, _rev: (0, 0)),
                pl.BlockSpec((H, 4 * H), lambda bi, ti, _rev: (0, 0)),
            ],
            out_specs=(
                pl.BlockSpec((Tc, Bc, H), lambda bi, ti, _rev: (ti, bi, 0)),
                # Whole-sequence tile per batch block, resident across the time axis
                # (block index constant in ti) so the reverse scatter can target any
                # time step; written back to HBM once per batch tile.
                pl.BlockSpec((T, Bc, 2 * H), lambda bi, ti, _rev: (0, bi, 0)),
            ),
            scratch_shapes=[pltpu.VMEM((Bc, H), jnp.float32) for _ in range(4)],
        ),
        compiler_params=pltpu.CompilerParams(
            dimension_semantics=("parallel", "arbitrary"),
            vmem_limit_bytes=vmem_limit),
    )(rev_idx, gxf, gxb, whf, whb)

    # Single cheap batch-first transpose in the wrapper (keeps all in-kernel dynamic
    # indexing on the major dim and all per-step stores as full tiles).
    lstm_out = jnp.transpose(cat_tm, (1, 0, 2))                  # (B, T, 2H)
    f_out = lstm_out[..., :H]                                    # forward LSTM outputs
    b_out = jnp.transpose(b_tm, (1, 0, 2))                       # backward LSTM outputs
    return lstm_out, (f_out, b_out)


class GazBiLSTMPallas:
    """JAX/Pallas port of Gaz_BiLSTM (single-layer LSTMs, eval-mode dropout)."""

    def __init__(self, input_size, hidden_size, key):
        self.input_size = input_size
        self.hidden_size = hidden_size
        H = hidden_size
        k = 1.0 / jnp.sqrt(jnp.asarray(H, jnp.float32))
        keys = jax.random.split(key, 8)

        def u(kk, shape):
            return jax.random.uniform(kk, shape, jnp.float32, -k, k)

        # forward-direction LSTM params (PyTorch layout: W_ih (4H,D), W_hh (4H,H))
        self.f_w_ih = u(keys[0], (4 * H, input_size))
        self.f_w_hh = u(keys[1], (4 * H, H))
        self.f_b_ih = u(keys[2], (4 * H,))
        self.f_b_hh = u(keys[3], (4 * H,))
        # backward-direction LSTM params
        self.b_w_ih = u(keys[4], (4 * H, input_size))
        self.b_w_hh = u(keys[5], (4 * H, H))
        self.b_b_ih = u(keys[6], (4 * H,))
        self.b_b_hh = u(keys[7], (4 * H,))

    def __call__(self, inputs, word_seq_length, **kwargs):
        f_inputs, b_inputs = inputs
        # self.drop / self.droplstm are identity in eval mode.
        return gaz_bilstm_forward(
            f_inputs, b_inputs, word_seq_length,
            self.f_w_ih, self.f_w_hh, self.f_b_ih, self.f_b_hh,
            self.b_w_ih, self.b_w_hh, self.b_b_ih, self.b_b_hh, **kwargs)


# ----------------------------- pure-JAX reference ------------------------------
def _lstm_reference(x, w_ih, w_hh, b_ih, b_hh):
    B, T, D = x.shape
    H = w_hh.shape[1]
    hp = jax.lax.Precision.HIGHEST

    def step(carry, x_t):
        h, c = carry
        gates = (jnp.dot(x_t, w_ih.T, precision=hp) + b_ih
                 + jnp.dot(h, w_hh.T, precision=hp) + b_hh)
        i, f, g, o = jnp.split(gates, 4, axis=-1)
        c = jax.nn.sigmoid(f) * c + jax.nn.sigmoid(i) * jnp.tanh(g)
        h = jax.nn.sigmoid(o) * jnp.tanh(c)
        return (h, c), h

    init = (jnp.zeros((B, H), jnp.float32), jnp.zeros((B, H), jnp.float32))
    _, hs = jax.lax.scan(step, init, jnp.transpose(x, (1, 0, 2)))
    return jnp.transpose(hs, (1, 0, 2))


def _reverse_padded_reference(x, lengths):
    B, T, _ = x.shape
    t_idx = jnp.arange(T)[None, :]
    L = lengths[:, None]
    rev_idx = jnp.where(t_idx < L, L - 1 - t_idx, t_idx)
    return jnp.take_along_axis(x, rev_idx[:, :, None], axis=1)


if __name__ == "__main__":
    key = jax.random.PRNGKey(0)
    k_in_f, k_in_b, k_params = jax.random.split(key, 3)

    batch, seq_len, input_size, hidden_size = 8, 8, 16, 32

    f_inputs = jax.random.normal(k_in_f, (batch, seq_len, input_size), jnp.float32)
    b_inputs = jax.random.normal(k_in_b, (batch, seq_len, input_size), jnp.float32)
    word_seq_length = jnp.array([8, 5, 3, 8, 1, 6, 7, 2], dtype=jnp.int32)

    model = GazBiLSTMPallas(input_size, hidden_size, k_params)

    # Pure-JAX reference.
    f_ref = _lstm_reference(f_inputs, model.f_w_ih, model.f_w_hh,
                            model.f_b_ih, model.f_b_hh)
    b_ref = _lstm_reference(b_inputs, model.b_w_ih, model.b_w_hh,
                            model.b_b_ih, model.b_b_hh)
    cat_ref = jnp.concatenate(
        [f_ref, _reverse_padded_reference(b_ref, word_seq_length)], axis=-1)

    # Config A: full-f32 recurrence, two time chunks (exercises the pipelined time
    # grid + VMEM state carry + resident concat tile).  Tight tolerance.
    lstm_out, (f_out, b_out) = model((f_inputs, b_inputs), word_seq_length,
                                     time_chunk=4, batch_chunk=8,
                                     dot_dtype=jnp.float32, proj_precision="highest")
    jax.block_until_ready((lstm_out, f_out, b_out))

    assert lstm_out.shape == (batch, seq_len, 2 * hidden_size)
    assert f_out.shape == (batch, seq_len, hidden_size)
    assert b_out.shape == (batch, seq_len, hidden_size)

    np.testing.assert_allclose(np.asarray(f_out), np.asarray(f_ref),
                               rtol=5e-4, atol=5e-4)
    np.testing.assert_allclose(np.asarray(b_out), np.asarray(b_ref),
                               rtol=5e-4, atol=5e-4)
    np.testing.assert_allclose(np.asarray(lstm_out), np.asarray(cat_ref),
                               rtol=5e-4, atol=5e-4)

    # Config B: bf16 recurrent dot + default-precision input projection (the
    # recommended production setting on v6e/v7x), single time chunk.
    lstm_out2, (f_out2, b_out2) = model((f_inputs, b_inputs), word_seq_length,
                                        time_chunk=8, batch_chunk=8,
                                        dot_dtype=jnp.bfloat16,
                                        proj_precision="default")
    jax.block_until_ready((lstm_out2, f_out2, b_out2))

    np.testing.assert_allclose(np.asarray(f_out2), np.asarray(f_ref),
                               rtol=2e-2, atol=2e-2)
    np.testing.assert_allclose(np.asarray(b_out2), np.asarray(b_ref),
                               rtol=2e-2, atol=2e-2)
    np.testing.assert_allclose(np.asarray(lstm_out2), np.asarray(cat_ref),
                               rtol=2e-2, atol=2e-2)

    print("KERNEL_OK")
</pallas_src>

<mosaic_0001>
module attributes {stable_mosaic.version = 11 : i64} {
  func.func @_bilstm_kernel(%arg0: i32, %arg1: i32, %arg2: memref<8x8xi32, #tpu.memory_space<smem>>, %arg3: memref<4x8x128xf32, #tpu.memory_space<vmem>>, %arg4: memref<4x8x128xf32, #tpu.memory_space<vmem>>, %arg5: memref<32x128xf32, #tpu.memory_space<vmem>>, %arg6: memref<32x128xf32, #tpu.memory_space<vmem>>, %arg7: memref<4x8x32xf32, #tpu.memory_space<vmem>>, %arg8: memref<8x8x64xf32, #tpu.memory_space<vmem>>, %arg9: memref<8x32xf32, #tpu.memory_space<vmem>>, %arg10: memref<8x32xf32, #tpu.memory_space<vmem>>, %arg11: memref<8x32xf32, #tpu.memory_space<vmem>>, %arg12: memref<8x32xf32, #tpu.memory_space<vmem>>) attributes {dimension_semantics = [#tpu.dimension_semantics<parallel>, #tpu.dimension_semantics<arbitrary>], iteration_bounds = array<i64: 1, 2>, scalar_prefetch = 1 : i64, scratch_operands = 4 : i64, tpu.core_type = #tpu.core_type<tc>, window_params = [{transform_indices = @transform_0, window_bounds = array<i64: 4, 8, 128>}, {transform_indices = @transform_1, window_bounds = array<i64: 4, 8, 128>}, {pipeline_mode = #tpu.pipeline_mode<synchronous>, transform_indices = @transform_2, window_bounds = array<i64: 32, 128>}, {pipeline_mode = #tpu.pipeline_mode<synchronous>, transform_indices = @transform_3, window_bounds = array<i64: 32, 128>}, {transform_indices = @transform_4, window_bounds = array<i64: 4, 8, 32>}, {transform_indices = @transform_5, window_bounds = array<i64: 8, 8, 64>}]} {
    %c0_i32 = arith.constant 0 : i32
    %0 = arith.cmpi eq, %arg1, %c0_i32 : i32
    %1 = arith.extui %0 : i1 to i32
    %c0_i32_0 = arith.constant 0 : i32
    %2 = arith.cmpi ne, %1, %c0_i32_0 : i32
    scf.if %2 {
      %cst_263 = arith.constant 0.000000e+00 : f32
      %649 = vector.broadcast %cst_263 : f32 to vector<8x32xf32>
      %c0_264 = arith.constant 0 : index
      %c0_265 = arith.constant 0 : index
      %650 = vector.load %arg9[%c0_264, %c0_265] : memref<8x32xf32, #tpu.memory_space<vmem>>, vector<8x32xf32>
      tpu.vector_store %arg9[%c0_264, %c0_265], %649 {strides = array<i32>} : memref<8x32xf32, #tpu.memory_space<vmem>>, vector<8x32xf32>,
      %c0_266 = arith.constant 0 : index
      %c0_267 = arith.constant 0 : index
      %651 = vector.load %arg10[%c0_266, %c0_267] : memref<8x32xf32, #tpu.memory_space<vmem>>, vector<8x32xf32>
      tpu.vector_store %arg10[%c0_266, %c0_267], %649 {strides = array<i32>} : memref<8x32xf32, #tpu.memory_space<vmem>>, vector<8x32xf32>,
      %c0_268 = arith.constant 0 : index
      %c0_269 = arith.constant 0 : index
      %652 = vector.load %arg11[%c0_268, %c0_269] : memref<8x32xf32, #tpu.memory_space<vmem>>, vector<8x32xf32>
      tpu.vector_store %arg11[%c0_268, %c0_269], %649 {strides = array<i32>} : memref<8x32xf32, #tpu.memory_space<vmem>>, vector<8x32xf32>,
      %c0_270 = arith.constant 0 : index
      %c0_271 = arith.constant 0 : index
      %653 = vector.load %arg12[%c0_270, %c0_271] : memref<8x32xf32, #tpu.memory_space<vmem>>, vector<8x32xf32>
      tpu.vector_store %arg12[%c0_270, %c0_271], %649 {strides = array<i32>} : memref<8x32xf32, #tpu.memory_space<vmem>>, vector<8x32xf32>,
    } else {
    }
    %c0 = arith.constant 0 : index
    %c0_1 = arith.constant 0 : index
    %3 = vector.load %arg5[%c0, %c0_1] : memref<32x128xf32, #tpu.memory_space<vmem>>, vector<32x128xf32>
    %c0_2 = arith.constant 0 : index
    %c0_3 = arith.constant 0 : index
    %4 = vector.load %arg6[%c0_2, %c0_3] : memref<32x128xf32, #tpu.memory_space<vmem>>, vector<32x128xf32>
    %c0_4 = arith.constant 0 : index
    %c0_5 = arith.constant 0 : index
    %5 = vector.load %arg9[%c0_4, %c0_5] : memref<8x32xf32, #tpu.memory_space<vmem>>, vector<8x32xf32>
    %c0_6 = arith.constant 0 : index
    %c0_7 = arith.constant 0 : index
    %6 = vector.load %arg10[%c0_6, %c0_7] : memref<8x32xf32, #tpu.memory_space<vmem>>, vector<8x32xf32>
    %c0_8 = arith.constant 0 : index
    %c0_9 = arith.constant 0 : index
    %7 = vector.load %arg11[%c0_8, %c0_9] : memref<8x32xf32, #tpu.memory_space<vmem>>, vector<8x32xf32>
    %c0_10 = arith.constant 0 : index
    %c0_11 = arith.constant 0 : index
    %8 = vector.load %arg12[%c0_10, %c0_11] : memref<8x32xf32, #tpu.memory_space<vmem>>, vector<8x32xf32>
    %c4_i32 = arith.constant 4 : i32
    %9 = arith.muli %arg1, %c4_i32 : i32
    %c0_i32_12 = arith.constant 0 : i32
    %10 = arith.addi %9, %c0_i32_12 : i32
    %c0_13 = arith.constant 0 : index
    %c0_14 = arith.constant 0 : index
    %c0_15 = arith.constant 0 : index
    %11 = vector.load %arg3[%c0_13, %c0_14, %c0_15] : memref<4x8x128xf32, #tpu.memory_space<vmem>>, vector<1x8x128xf32>
    %12 = vector.shape_cast %11 : vector<1x8x128xf32> to vector<8x128xf32>
    %cst = arith.constant dense<0.000000e+00> : vector<8x128xf32>
    %13 = tpu.matmul %5, %3, %cst {dimension_numbers = #tpu.dot_dimension_numbers<[1], [0], [0], [1], [0, 0, 1, 1], [], []>} : vector<8x32xf32>, vector<32x128xf32>, vector<8x128xf32> -> vector<8x128xf32>
    %14 = arith.addf %12, %13 : vector<8x128xf32>
    %15 = vector.extract_strided_slice %14 {offsets = [0, 0], sizes = [8, 32], strides = [1, 1]} : vector<8x128xf32> to vector<8x32xf32>
    %cst_16 = arith.constant 5.000000e-01 : f32
    %16 = vector.broadcast %cst_16 : f32 to vector<8x32xf32>
    %17 = arith.mulf %16, %15 : vector<8x32xf32>
    %18 = math.tanh %17 : vector<8x32xf32>
    %cst_17 = arith.constant 5.000000e-01 : f32
    %19 = vector.broadcast %cst_17 : f32 to vector<8x32xf32>
    %20 = arith.mulf %19, %18 : vector<8x32xf32>
    %cst_18 = arith.constant 5.000000e-01 : f32
    %21 = vector.broadcast %cst_18 : f32 to vector<8x32xf32>
    %22 = arith.addf %20, %21 : vector<8x32xf32>
    %23 = vector.extract_strided_slice %14 {offsets = [0, 32], sizes = [8, 32], strides = [1, 1]} : vector<8x128xf32> to vector<8x32xf32>
    %cst_19 = arith.constant 5.000000e-01 : f32
    %24 = vector.broadcast %cst_19 : f32 to vector<8x32xf32>
    %25 = arith.mulf %24, %23 : vector<8x32xf32>
    %26 = math.tanh %25 : vector<8x32xf32>
    %cst_20 = arith.constant 5.000000e-01 : f32
    %27 = vector.broadcast %cst_20 : f32 to vector<8x32xf32>
    %28 = arith.mulf %27, %26 : vector<8x32xf32>
    %cst_21 = arith.constant 5.000000e-01 : f32
    %29 = vector.broadcast %cst_21 : f32 to vector<8x32xf32>
    %30 = arith.addf %28, %29 : vector<8x32xf32>
    %31 = vector.extract_strided_slice %14 {offsets = [0, 64], sizes = [8, 32], strides = [1, 1]} : vector<8x128xf32> to vector<8x32xf32>
    %32 = math.tanh %31 : vector<8x32xf32>
    %33 = vector.extract_strided_slice %14 {offsets = [0, 96], sizes = [8, 32], strides = [1, 1]} : vector<8x128xf32> to vector<8x32xf32>
    %cst_22 = arith.constant 5.000000e-01 : f32
    %34 = vector.broadcast %cst_22 : f32 to vector<8x32xf32>
    %35 = arith.mulf %34, %33 : vector<8x32xf32>
    %36 = math.tanh %35 : vector<8x32xf32>
    %cst_23 = arith.constant 5.000000e-01 : f32
    %37 = vector.broadcast %cst_23 : f32 to vector<8x32xf32>
    %38 = arith.mulf %37, %36 : vector<8x32xf32>
    %cst_24 = arith.constant 5.000000e-01 : f32
    %39 = vector.broadcast %cst_24 : f32 to vector<8x32xf32>
    %40 = arith.addf %38, %39 : vector<8x32xf32>
    %41 = arith.mulf %30, %6 : vector<8x32xf32>
    %42 = arith.mulf %22, %32 : vector<8x32xf32>
    %43 = arith.addf %41, %42 : vector<8x32xf32>
    %44 = math.tanh %43 : vector<8x32xf32>
    %45 = arith.mulf %40, %44 : vector<8x32xf32>
    %c0_25 = arith.constant 0 : index
    %c0_26 = arith.constant 0 : index
    %c0_27 = arith.constant 0 : index
    %46 = vector.load %arg4[%c0_25, %c0_26, %c0_27] : memref<4x8x128xf32, #tpu.memory_space<vmem>>, vector<1x8x128xf32>
    %47 = vector.shape_cast %46 : vector<1x8x128xf32> to vector<8x128xf32>
    %cst_28 = arith.constant dense<0.000000e+00> : vector<8x128xf32>
    %48 = tpu.matmul %7, %4, %cst_28 {dimension_numbers = #tpu.dot_dimension_numbers<[1], [0], [0], [1], [0, 0, 1, 1], [], []>} : vector<8x32xf32>, vector<32x128xf32>, vector<8x128xf32> -> vector<8x128xf32>
    %49 = arith.addf %47, %48 : vector<8x128xf32>
    %50 = vector.extract_strided_slice %49 {offsets = [0, 0], sizes = [8, 32], strides = [1, 1]} : vector<8x128xf32> to vector<8x32xf32>
    %cst_29 = arith.constant 5.000000e-01 : f32
    %51 = vector.broadcast %cst_29 : f32 to vector<8x32xf32>
    %52 = arith.mulf %51, %50 : vector<8x32xf32>
    %53 = math.tanh %52 : vector<8x32xf32>
    %cst_30 = arith.constant 5.000000e-01 : f32
    %54 = vector.broadcast %cst_30 : f32 to vector<8x32xf32>
    %55 = arith.mulf %54, %53 : vector<8x32xf32>
    %cst_31 = arith.constant 5.000000e-01 : f32
    %56 = vector.broadcast %cst_31 : f32 to vector<8x32xf32>
    %57 = arith.addf %55, %56 : vector<8x32xf32>
    %58 = vector.extract_strided_slice %49 {offsets = [0, 32], sizes = [8, 32], strides = [1, 1]} : vector<8x128xf32> to vector<8x32xf32>
    %cst_32 = arith.constant 5.000000e-01 : f32
    %59 = vector.broadcast %cst_32 : f32 to vector<8x32xf32>
    %60 = arith.mulf %59, %58 : vector<8x32xf32>
    %61 = math.tanh %60 : vector<8x32xf32>
    %cst_33 = arith.constant 5.000000e-01 : f32
    %62 = vector.broadcast %cst_33 : f32 to vector<8x32xf32>
    %63 = arith.mulf %62, %61 : vector<8x32xf32>
    %cst_34 = arith.constant 5.000000e-01 : f32
    %64 = vector.broadcast %cst_34 : f32 to vector<8x32xf32>
    %65 = arith.addf %63, %64 : vector<8x32xf32>
    %66 = vector.extract_strided_slice %49 {offsets = [0, 64], sizes = [8, 32], strides = [1, 1]} : vector<8x128xf32> to vector<8x32xf32>
    %67 = math.tanh %66 : vector<8x32xf32>
    %68 = vector.extract_strided_slice %49 {offsets = [0, 96], sizes = [8, 32], strides = [1, 1]} : vector<8x128xf32> to vector<8x32xf32>
    %cst_35 = arith.constant 5.000000e-01 : f32
    %69 = vector.broadcast %cst_35 : f32 to vector<8x32xf32>
    %70 = arith.mulf %69, %68 : vector<8x32xf32>
    %71 = math.tanh %70 : vector<8x32xf32>
    %cst_36 = arith.constant 5.000000e-01 : f32
    %72 = vector.broadcast %cst_36 : f32 to vector<8x32xf32>
    %73 = arith.mulf %72, %71 : vector<8x32xf32>
    %cst_37 = arith.constant 5.000000e-01 : f32
    %74 = vector.broadcast %cst_37 : f32 to vector<8x32xf32>
    %75 = arith.addf %73, %74 : vector<8x32xf32>
    %76 = arith.mulf %65, %8 : vector<8x32xf32>
    %77 = arith.mulf %57, %67 : vector<8x32xf32>
    %78 = arith.addf %76, %77 : vector<8x32xf32>
    %79 = math.tanh %78 : vector<8x32xf32>
    %80 = arith.mulf %75, %79 : vector<8x32xf32>
    %c0_38 = arith.constant 0 : index
    %c0_39 = arith.constant 0 : index
    %c0_40 = arith.constant 0 : index
    %81 = vector.load %arg7[%c0_38, %c0_39, %c0_40] : memref<4x8x32xf32, #tpu.memory_space<vmem>>, vector<1x8x32xf32>
    %82 = vector.shape_cast %81 : vector<1x8x32xf32> to vector<8x32xf32>
    %83 = vector.shape_cast %80 : vector<8x32xf32> to vector<1x8x32xf32>
    tpu.vector_store %arg7[%c0_38, %c0_39, %c0_40], %83 {strides = array<i32>} : memref<4x8x32xf32, #tpu.memory_space<vmem>>, vector<1x8x32xf32>,
    %84 = arith.index_cast %10 : i32 to index
    %c0_41 = arith.constant 0 : index
    %c0_42 = arith.constant 0 : index
    %85 = vector.load %arg8[%84, %c0_41, %c0_42] : memref<8x8x64xf32, #tpu.memory_space<vmem>>, vector<1x8x32xf32>
    %86 = vector.shape_cast %85 : vector<1x8x32xf32> to vector<8x32xf32>
    %87 = vector.shape_cast %45 : vector<8x32xf32> to vector<1x8x32xf32>
    tpu.vector_store %arg8[%84, %c0_41, %c0_42], %87 {strides = array<i32>} : memref<8x8x64xf32, #tpu.memory_space<vmem>>, vector<1x8x32xf32>,
    %c8_i32 = arith.constant 8 : i32
    %88 = arith.muli %arg0, %c8_i32 : i32
    %c0_i32_43 = arith.constant 0 : i32
    %89 = arith.addi %88, %c0_i32_43 : i32
    %90 = arith.index_cast %89 : i32 to index
    %91 = arith.index_cast %10 : i32 to index
    %92 = memref.load %arg2[%90, %91] : memref<8x8xi32, #tpu.memory_space<smem>>
    %93 = vector.extract_strided_slice %80 {offsets = [0, 0], sizes = [1, 32], strides = [1, 1]} : vector<8x32xf32> to vector<1x32xf32>
    %94 = arith.index_cast %92 : i32 to index
    %c0_44 = arith.constant 0 : index
    %c32 = arith.constant 32 : index
    %95 = vector.load %arg8[%94, %c0_44, %c32] : memref<8x8x64xf32, #tpu.memory_space<vmem>>, vector<1x1x32xf32>
    %96 = vector.shape_cast %95 : vector<1x1x32xf32> to vector<1x32xf32>
    %97 = vector.shape_cast %93 : vector<1x32xf32> to vector<1x1x32xf32>
    tpu.vector_store %arg8[%94, %c0_44, %c32], %97 {strides = array<i32>} : memref<8x8x64xf32, #tpu.memory_space<vmem>>, vector<1x1x32xf32>,
    %c8_i32_45 = arith.constant 8 : i32
    %98 = arith.muli %arg0, %c8_i32_45 : i32
    %c1_i32 = arith.constant 1 : i32
    %99 = arith.addi %98, %c1_i32 : i32
    %100 = arith.index_cast %99 : i32 to index
    %101 = arith.index_cast %10 : i32 to index
    %102 = memref.load %arg2[%100, %101] : memref<8x8xi32, #tpu.memory_space<smem>>
    %103 = vector.extract_strided_slice %80 {offsets = [1, 0], sizes = [1, 32], strides = [1, 1]} : vector<8x32xf32> to vector<1x32xf32>
    %104 = arith.index_cast %102 : i32 to index
    %c1 = arith.constant 1 : index
    %c32_46 = arith.constant 32 : index
    %105 = vector.load %arg8[%104, %c1, %c32_46] : memref<8x8x64xf32, #tpu.memory_space<vmem>>, vector<1x1x32xf32>
    %106 = vector.shape_cast %105 : vector<1x1x32xf32> to vector<1x32xf32>
    %107 = vector.shape_cast %103 : vector<1x32xf32> to vector<1x1x32xf32>
    tpu.vector_store %arg8[%104, %c1, %c32_46], %107 {strides = array<i32>} : memref<8x8x64xf32, #tpu.memory_space<vmem>>, vector<1x1x32xf32>,
    %c8_i32_47 = arith.constant 8 : i32
    %108 = arith.muli %arg0, %c8_i32_47 : i32
    %c2_i32 = arith.constant 2 : i32
    %109 = arith.addi %108, %c2_i32 : i32
    %110 = arith.index_cast %109 : i32 to index
    %111 = arith.index_cast %10 : i32 to index
    %112 = memref.load %arg2[%110, %111] : memref<8x8xi32, #tpu.memory_space<smem>>
    %113 = vector.extract_strided_slice %80 {offsets = [2, 0], sizes = [1, 32], strides = [1, 1]} : vector<8x32xf32> to vector<1x32xf32>
    %114 = arith.index_cast %112 : i32 to index
    %c2 = arith.constant 2 : index
    %c32_48 = arith.constant 32 : index
    %115 = vector.load %arg8[%114, %c2, %c32_48] : memref<8x8x64xf32, #tpu.memory_space<vmem>>, vector<1x1x32xf32>
    %116 = vector.shape_cast %115 : vector<1x1x32xf32> to vector<1x32xf32>
    %117 = vector.shape_cast %113 : vector<1x32xf32> to vector<1x1x32xf32>
    tpu.vector_store %arg8[%114, %c2, %c32_48], %117 {strides = array<i32>} : memref<8x8x64xf32, #tpu.memory_space<vmem>>, vector<1x1x32xf32>,
    %c8_i32_49 = arith.constant 8 : i32
    %118 = arith.muli %arg0, %c8_i32_49 : i32
    %c3_i32 = arith.constant 3 : i32
    %119 = arith.addi %118, %c3_i32 : i32
    %120 = arith.index_cast %119 : i32 to index
    %121 = arith.index_cast %10 : i32 to index
    %122 = memref.load %arg2[%120, %121] : memref<8x8xi32, #tpu.memory_space<smem>>
    %123 = vector.extract_strided_slice %80 {offsets = [3, 0], sizes = [1, 32], strides = [1, 1]} : vector<8x32xf32> to vector<1x32xf32>
    %124 = arith.index_cast %122 : i32 to index
    %c3 = arith.constant 3 : index
    %c32_50 = arith.constant 32 : index
    %125 = vector.load %arg8[%124, %c3, %c32_50] : memref<8x8x64xf32, #tpu.memory_space<vmem>>, vector<1x1x32xf32>
    %126 = vector.shape_cast %125 : vector<1x1x32xf32> to vector<1x32xf32>
    %127 = vector.shape_cast %123 : vector<1x32xf32> to vector<1x1x32xf32>
    tpu.vector_store %arg8[%124, %c3, %c32_50], %127 {strides = array<i32>} : memref<8x8x64xf32, #tpu.memory_space<vmem>>, vector<1x1x32xf32>,
    %c8_i32_51 = arith.constant 8 : i32
    %128 = arith.muli %arg0, %c8_i32_51 : i32
    %c4_i32_52 = arith.constant 4 : i32
    %129 = arith.addi %128, %c4_i32_52 : i32
    %130 = arith.index_cast %129 : i32 to index
    %131 = arith.index_cast %10 : i32 to index
    %132 = memref.load %arg2[%130, %131] : memref<8x8xi32, #tpu.memory_space<smem>>
    %133 = vector.extract_strided_slice %80 {offsets = [4, 0], sizes = [1, 32], strides = [1, 1]} : vector<8x32xf32> to vector<1x32xf32>
    %134 = arith.index_cast %132 : i32 to index
    %c4 = arith.constant 4 : index
    %c32_53 = arith.constant 32 : index
    %135 = vector.load %arg8[%134, %c4, %c32_53] : memref<8x8x64xf32, #tpu.memory_space<vmem>>, vector<1x1x32xf32>
    %136 = vector.shape_cast %135 : vector<1x1x32xf32> to vector<1x32xf32>
    %137 = vector.shape_cast %133 : vector<1x32xf32> to vector<1x1x32xf32>
    tpu.vector_store %arg8[%134, %c4, %c32_53], %137 {strides = array<i32>} : memref<8x8x64xf32, #tpu.memory_space<vmem>>, vector<1x1x32xf32>,
    %c8_i32_54 = arith.constant 8 : i32
    %138 = arith.muli %arg0, %c8_i32_54 : i32
    %c5_i32 = arith.constant 5 : i32
    %139 = arith.addi %138, %c5_i32 : i32
    %140 = arith.index_cast %139 : i32 to index
    %141 = arith.index_cast %10 : i32 to index
    %142 = memref.load %arg2[%140, %141] : memref<8x8xi32, #tpu.memory_space<smem>>
    %143 = vector.extract_strided_slice %80 {offsets = [5, 0], sizes = [1, 32], strides = [1, 1]} : vector<8x32xf32> to vector<1x32xf32>
    %144 = arith.index_cast %142 : i32 to index
    %c5 = arith.constant 5 : index
    %c32_55 = arith.constant 32 : index
    %145 = vector.load %arg8[%144, %c5, %c32_55] : memref<8x8x64xf32, #tpu.memory_space<vmem>>, vector<1x1x32xf32>
    %146 = vector.shape_cast %145 : vector<1x1x32xf32> to vector<1x32xf32>
    %147 = vector.shape_cast %143 : vector<1x32xf32> to vector<1x1x32xf32>
    tpu.vector_store %arg8[%144, %c5, %c32_55], %147 {strides = array<i32>} : memref<8x8x64xf32, #tpu.memory_space<vmem>>, vector<1x1x32xf32>,
    %c8_i32_56 = arith.constant 8 : i32
    %148 = arith.muli %arg0, %c8_i32_56 : i32
    %c6_i32 = arith.constant 6 : i32
    %149 = arith.addi %148, %c6_i32 : i32
    %150 = arith.index_cast %149 : i32 to index
    %151 = arith.index_cast %10 : i32 to index
    %152 = memref.load %arg2[%150, %151] : memref<8x8xi32, #tpu.memory_space<smem>>
    %153 = vector.extract_strided_slice %80 {offsets = [6, 0], sizes = [1, 32], strides = [1, 1]} : vector<8x32xf32> to vector<1x32xf32>
    %154 = arith.index_cast %152 : i32 to index
    %c6 = arith.constant 6 : index
    %c32_57 = arith.constant 32 : index
    %155 = vector.load %arg8[%154, %c6, %c32_57] : memref<8x8x64xf32, #tpu.memory_space<vmem>>, vector<1x1x32xf32>
    %156 = vector.shape_cast %155 : vector<1x1x32xf32> to vector<1x32xf32>
    %157 = vector.shape_cast %153 : vector<1x32xf32> to vector<1x1x32xf32>
    tpu.vector_store %arg8[%154, %c6, %c32_57], %157 {strides = array<i32>} : memref<8x8x64xf32, #tpu.memory_space<vmem>>, vector<1x1x32xf32>,
    %c8_i32_58 = arith.constant 8 : i32
    %158 = arith.muli %arg0, %c8_i32_58 : i32
    %c7_i32 = arith.constant 7 : i32
    %159 = arith.addi %158, %c7_i32 : i32
    %160 = arith.index_cast %159 : i32 to index
    %161 = arith.index_cast %10 : i32 to index
    %162 = memref.load %arg2[%160, %161] : memref<8x8xi32, #tpu.memory_space<smem>>
    %163 = vector.extract_strided_slice %80 {offsets = [7, 0], sizes = [1, 32], strides = [1, 1]} : vector<8x32xf32> to vector<1x32xf32>
    %164 = arith.index_cast %162 : i32 to index
    %c7 = arith.constant 7 : index
    %c32_59 = arith.constant 32 : index
    %165 = vector.load %arg8[%164, %c7, %c32_59] : memref<8x8x64xf32, #tpu.memory_space<vmem>>, vector<1x1x32xf32>
    %166 = vector.shape_cast %165 : vector<1x1x32xf32> to vector<1x32xf32>
    %167 = vector.shape_cast %163 : vector<1x32xf32> to vector<1x1x32xf32>
    tpu.vector_store %arg8[%164, %c7, %c32_59], %167 {strides = array<i32>} : memref<8x8x64xf32, #tpu.memory_space<vmem>>, vector<1x1x32xf32>,
    %c4_i32_60 = arith.constant 4 : i32
    %168 = arith.muli %arg1, %c4_i32_60 : i32
    %c1_i32_61 = arith.constant 1 : i32
    %169 = arith.addi %168, %c1_i32_61 : i32
    %c1_62 = arith.constant 1 : index
    %c0_63 = arith.constant 0 : index
    %c0_64 = arith.constant 0 : index
    %170 = vector.load %arg3[%c1_62, %c0_63, %c0_64] : memref<4x8x128xf32, #tpu.memory_space<vmem>>, vector<1x8x128xf32>
    %171 = vector.shape_cast %170 : vector<1x8x128xf32> to vector<8x128xf32>
    %cst_65 = arith.constant dense<0.000000e+00> : vector<8x128xf32>
    %172 = tpu.matmul %45, %3, %cst_65 {dimension_numbers = #tpu.dot_dimension_numbers<[1], [0], [0], [1], [0, 0, 1, 1], [], []>} : vector<8x32xf32>, vector<32x128xf32>, vector<8x128xf32> -> vector<8x128xf32>
    %173 = arith.addf %171, %172 : vector<8x128xf32>
    %174 = vector.extract_strided_slice %173 {offsets = [0, 0], sizes = [8, 32], strides = [1, 1]} : vector<8x128xf32> to vector<8x32xf32>
    %cst_66 = arith.constant 5.000000e-01 : f32
    %175 = vector.broadcast %cst_66 : f32 to vector<8x32xf32>
    %176 = arith.mulf %175, %174 : vector<8x32xf32>
    %177 = math.tanh %176 : vector<8x32xf32>
    %cst_67 = arith.constant 5.000000e-01 : f32
    %178 = vector.broadcast %cst_67 : f32 to vector<8x32xf32>
    %179 = arith.mulf %178, %177 : vector<8x32xf32>
    %cst_68 = arith.constant 5.000000e-01 : f32
    %180 = vector.broadcast %cst_68 : f32 to vector<8x32xf32>
    %181 = arith.addf %179, %180 : vector<8x32xf32>
    %182 = vector.extract_strided_slice %173 {offsets = [0, 32], sizes = [8, 32], strides = [1, 1]} : vector<8x128xf32> to vector<8x32xf32>
    %cst_69 = arith.constant 5.000000e-01 : f32
    %183 = vector.broadcast %cst_69 : f32 to vector<8x32xf32>
    %184 = arith.mulf %183, %182 : vector<8x32xf32>
    %185 = math.tanh %184 : vector<8x32xf32>
    %cst_70 = arith.constant 5.000000e-01 : f32
    %186 = vector.broadcast %cst_70 : f32 to vector<8x32xf32>
    %187 = arith.mulf %186, %185 : vector<8x32xf32>
    %cst_71 = arith.constant 5.000000e-01 : f32
    %188 = vector.broadcast %cst_71 : f32 to vector<8x32xf32>
    %189 = arith.addf %187, %188 : vector<8x32xf32>
    %190 = vector.extract_strided_slice %173 {offsets = [0, 64], sizes = [8, 32], strides = [1, 1]} : vector<8x128xf32> to vector<8x32xf32>
    %191 = math.tanh %190 : vector<8x32xf32>
    %192 = vector.extract_strided_slice %173 {offsets = [0, 96], sizes = [8, 32], strides = [1, 1]} : vector<8x128xf32> to vector<8x32xf32>
    %cst_72 = arith.constant 5.000000e-01 : f32
    %193 = vector.broadcast %cst_72 : f32 to vector<8x32xf32>
    %194 = arith.mulf %193, %192 : vector<8x32xf32>
    %195 = math.tanh %194 : vector<8x32xf32>
    %cst_73 = arith.constant 5.000000e-01 : f32
    %196 = vector.broadcast %cst_73 : f32 to vector<8x32xf32>
    %197 = arith.mulf %196, %195 : vector<8x32xf32>
    %cst_74 = arith.constant 5.000000e-01 : f32
    %198 = vector.broadcast %cst_74 : f32 to vector<8x32xf32>
    %199 = arith.addf %197, %198 : vector<8x32xf32>
    %200 = arith.mulf %189, %43 : vector<8x32xf32>
    %201 = arith.mulf %181, %191 : vector<8x32xf32>
    %202 = arith.addf %200, %201 : vector<8x32xf32>
    %203 = math.tanh %202 : vector<8x32xf32>
    %204 = arith.mulf %199, %203 : vector<8x32xf32>
    %c1_75 = arith.constant 1 : index
    %c0_76 = arith.constant 0 : index
    %c0_77 = arith.constant 0 : index
    %205 = vector.load %arg4[%c1_75, %c0_76, %c0_77] : memref<4x8x128xf32, #tpu.memory_space<vmem>>, vector<1x8x128xf32>
    %206 = vector.shape_cast %205 : vector<1x8x128xf32> to vector<8x128xf32>
    %cst_78 = arith.constant dense<0.000000e+00> : vector<8x128xf32>
    %207 = tpu.matmul %80, %4, %cst_78 {dimension_numbers = #tpu.dot_dimension_numbers<[1], [0], [0], [1], [0, 0, 1, 1], [], []>} : vector<8x32xf32>, vector<32x128xf32>, vector<8x128xf32> -> vector<8x128xf32>
    %208 = arith.addf %206, %207 : vector<8x128xf32>
    %209 = vector.extract_strided_slice %208 {offsets = [0, 0], sizes = [8, 32], strides = [1, 1]} : vector<8x128xf32> to vector<8x32xf32>
    %cst_79 = arith.constant 5.000000e-01 : f32
    %210 = vector.broadcast %cst_79 : f32 to vector<8x32xf32>
    %211 = arith.mulf %210, %209 : vector<8x32xf32>
    %212 = math.tanh %211 : vector<8x32xf32>
    %cst_80 = arith.constant 5.000000e-01 : f32
    %213 = vector.broadcast %cst_80 : f32 to vector<8x32xf32>
    %214 = arith.mulf %213, %212 : vector<8x32xf32>
    %cst_81 = arith.constant 5.000000e-01 : f32
    %215 = vector.broadcast %cst_81 : f32 to vector<8x32xf32>
    %216 = arith.addf %214, %215 : vector<8x32xf32>
    %217 = vector.extract_strided_slice %208 {offsets = [0, 32], sizes = [8, 32], strides = [1, 1]} : vector<8x128xf32> to vector<8x32xf32>
    %cst_82 = arith.constant 5.000000e-01 : f32
    %218 = vector.broadcast %cst_82 : f32 to vector<8x32xf32>
    %219 = arith.mulf %218, %217 : vector<8x32xf32>
    %220 = math.tanh %219 : vector<8x32xf32>
    %cst_83 = arith.constant 5.000000e-01 : f32
    %221 = vector.broadcast %cst_83 : f32 to vector<8x32xf32>
    %222 = arith.mulf %221, %220 : vector<8x32xf32>
    %cst_84 = arith.constant 5.000000e-01 : f32
    %223 = vector.broadcast %cst_84 : f32 to vector<8x32xf32>
    %224 = arith.addf %222, %223 : vector<8x32xf32>
    %225 = vector.extract_strided_slice %208 {offsets = [0, 64], sizes = [8, 32], strides = [1, 1]} : vector<8x128xf32> to vector<8x32xf32>
    %226 = math.tanh %225 : vector<8x32xf32>
    %227 = vector.extract_strided_slice %208 {offsets = [0, 96], sizes = [8, 32], strides = [1, 1]} : vector<8x128xf32> to vector<8x32xf32>
    %cst_85 = arith.constant 5.000000e-01 : f32
    %228 = vector.broadcast %cst_85 : f32 to vector<8x32xf32>
    %229 = arith.mulf %228, %227 : vector<8x32xf32>
    %230 = math.tanh %229 : vector<8x32xf32>
    %cst_86 = arith.constant 5.000000e-01 : f32
    %231 = vector.broadcast %cst_86 : f32 to vector<8x32xf32>
    %232 = arith.mulf %231, %230 : vector<8x32xf32>
    %cst_87 = arith.constant 5.000000e-01 : f32
    %233 = vector.broadcast %cst_87 : f32 to vector<8x32xf32>
    %234 = arith.addf %232, %233 : vector<8x32xf32>
    %235 = arith.mulf %224, %78 : vector<8x32xf32>
    %236 = arith.mulf %216, %226 : vector<8x32xf32>
    %237 = arith.addf %235, %236 : vector<8x32xf32>
    %238 = math.tanh %237 : vector<8x32xf32>
    %239 = arith.mulf %234, %238 : vector<8x32xf32>
    %c1_88 = arith.constant 1 : index
    %c0_89 = arith.constant 0 : index
    %c0_90 = arith.constant 0 : index
    %240 = vector.load %arg7[%c1_88, %c0_89, %c0_90] : memref<4x8x32xf32, #tpu.memory_space<vmem>>, vector<1x8x32xf32>
    %241 = vector.shape_cast %240 : vector<1x8x32xf32> to vector<8x32xf32>
    %242 = vector.shape_cast %239 : vector<8x32xf32> to vector<1x8x32xf32>
    tpu.vector_store %arg7[%c1_88, %c0_89, %c0_90], %242 {strides = array<i32>} : memref<4x8x32xf32, #tpu.memory_space<vmem>>, vector<1x8x32xf32>,
    %243 = arith.index_cast %169 : i32 to index
    %c0_91 = arith.constant 0 : index
    %c0_92 = arith.constant 0 : index
    %244 = vector.load %arg8[%243, %c0_91, %c0_92] : memref<8x8x64xf32, #tpu.memory_space<vmem>>, vector<1x8x32xf32>
    %245 = vector.shape_cast %244 : vector<1x8x32xf32> to vector<8x32xf32>
    %246 = vector.shape_cast %204 : vector<8x32xf32> to vector<1x8x32xf32>
    tpu.vector_store %arg8[%243, %c0_91, %c0_92], %246 {strides = array<i32>} : memref<8x8x64xf32, #tpu.memory_space<vmem>>, vector<1x8x32xf32>,
    %c8_i32_93 = arith.constant 8 : i32
    %247 = arith.muli %arg0, %c8_i32_93 : i32
    %c0_i32_94 = arith.constant 0 : i32
    %248 = arith.addi %247, %c0_i32_94 : i32
    %249 = arith.index_cast %248 : i32 to index
    %250 = arith.index_cast %169 : i32 to index
    %251 = memref.load %arg2[%249, %250] : memref<8x8xi32, #tpu.memory_space<smem>>
    %252 = vector.extract_strided_slice %239 {offsets = [0, 0], sizes = [1, 32], strides = [1, 1]} : vector<8x32xf32> to vector<1x32xf32>
    %253 = arith.index_cast %251 : i32 to index
    %c0_95 = arith.constant 0 : index
    %c32_96 = arith.constant 32 : index
    %254 = vector.load %arg8[%253, %c0_95, %c32_96] : memref<8x8x64xf32, #tpu.memory_space<vmem>>, vector<1x1x32xf32>
    %255 = vector.shape_cast %254 : vector<1x1x32xf32> to vector<1x32xf32>
    %256 = vector.shape_cast %252 : vector<1x32xf32> to vector<1x1x32xf32>
    tpu.vector_store %arg8[%253, %c0_95, %c32_96], %256 {strides = array<i32>} : memref<8x8x64xf32, #tpu.memory_space<vmem>>, vector<1x1x32xf32>,
    %c8_i32_97 = arith.constant 8 : i32
    %257 = arith.muli %arg0, %c8_i32_97 : i32
    %c1_i32_98 = arith.constant 1 : i32
    %258 = arith.addi %257, %c1_i32_98 : i32
    %259 = arith.index_cast %258 : i32 to index
    %260 = arith.index_cast %169 : i32 to index
    %261 = memref.load %arg2[%259, %260] : memref<8x8xi32, #tpu.memory_space<smem>>
    %262 = vector.extract_strided_slice %239 {offsets = [1, 0], sizes = [1, 32], strides = [1, 1]} : vector<8x32xf32> to vector<1x32xf32>
    %263 = arith.index_cast %261 : i32 to index
    %c1_99 = arith.constant 1 : index
    %c32_100 = arith.constant 32 : index
    %264 = vector.load %arg8[%263, %c1_99, %c32_100] : memref<8x8x64xf32, #tpu.memory_space<vmem>>, vector<1x1x32xf32>
    %265 = vector.shape_cast %264 : vector<1x1x32xf32> to vector<1x32xf32>
    %266 = vector.shape_cast %262 : vector<1x32xf32> to vector<1x1x32xf32>
    tpu.vector_store %arg8[%263, %c1_99, %c32_100], %266 {strides = array<i32>} : memref<8x8x64xf32, #tpu.memory_space<vmem>>, vector<1x1x32xf32>,
    %c8_i32_101 = arith.constant 8 : i32
    %267 = arith.muli %arg0, %c8_i32_101 : i32
    %c2_i32_102 = arith.constant 2 : i32
    %268 = arith.addi %267, %c2_i32_102 : i32
    %269 = arith.index_cast %268 : i32 to index
    %270 = arith.index_cast %169 : i32 to index
    %271 = memref.load %arg2[%269, %270] : memref<8x8xi32, #tpu.memory_space<smem>>
    %272 = vector.extract_strided_slice %239 {offsets = [2, 0], sizes = [1, 32], strides = [1, 1]} : vector<8x32xf32> to vector<1x32xf32>
    %273 = arith.index_cast %271 : i32 to index
    %c2_103 = arith.constant 2 : index
    %c32_104 = arith.constant 32 : index
    %274 = vector.load %arg8[%273, %c2_103, %c32_104] : memref<8x8x64xf32, #tpu.memory_space<vmem>>, vector<1x1x32xf32>
    %275 = vector.shape_cast %274 : vector<1x1x32xf32> to vector<1x32xf32>
    %276 = vector.shape_cast %272 : vector<1x32xf32> to vector<1x1x32xf32>
    tpu.vector_store %arg8[%273, %c2_103, %c32_104], %276 {strides = array<i32>} : memref<8x8x64xf32, #tpu.memory_space<vmem>>, vector<1x1x32xf32>,
    %c8_i32_105 = arith.constant 8 : i32
    %277 = arith.muli %arg0, %c8_i32_105 : i32
    %c3_i32_106 = arith.constant 3 : i32
    %278 = arith.addi %277, %c3_i32_106 : i32
    %279 = arith.index_cast %278 : i32 to index
    %280 = arith.index_cast %169 : i32 to index
    %281 = memref.load %arg2[%279, %280] : memref<8x8xi32, #tpu.memory_space<smem>>
    %282 = vector.extract_strided_slice %239 {offsets = [3, 0], sizes = [1, 32], strides = [1, 1]} : vector<8x32xf32> to vector<1x32xf32>
    %283 = arith.index_cast %281 : i32 to index
    %c3_107 = arith.constant 3 : index
    %c32_108 = arith.constant 32 : index
    %284 = vector.load %arg8[%283, %c3_107, %c32_108] : memref<8x8x64xf32, #tpu.memory_space<vmem>>, vector<1x1x32xf32>
    %285 = vector.shape_cast %284 : vector<1x1x32xf32> to vector<1x32xf32>
    %286 = vector.shape_cast %282 : vector<1x32xf32> to vector<1x1x32xf32>
    tpu.vector_store %arg8[%283, %c3_107, %c32_108], %286 {strides = array<i32>} : memref<8x8x64xf32, #tpu.memory_space<vmem>>, vector<1x1x32xf32>,
    %c8_i32_109 = arith.constant 8 : i32
    %287 = arith.muli %arg0, %c8_i32_109 : i32
    %c4_i32_110 = arith.constant 4 : i32
    %288 = arith.addi %287, %c4_i32_110 : i32
    %289 = arith.index_cast %288 : i32 to index
    %290 = arith.index_cast %169 : i32 to index
    %291 = memref.load %arg2[%289, %290] : memref<8x8xi32, #tpu.memory_space<smem>>
    %292 = vector.extract_strided_slice %239 {offsets = [4, 0], sizes = [1, 32], strides = [1, 1]} : vector<8x32xf32> to vector<1x32xf32>
    %293 = arith.index_cast %291 : i32 to index
    %c4_111 = arith.constant 4 : index
    %c32_112 = arith.constant 32 : index
    %294 = vector.load %arg8[%293, %c4_111, %c32_112] : memref<8x8x64xf32, #tpu.memory_space<vmem>>, vector<1x1x32xf32>
    %295 = vector.shape_cast %294 : vector<1x1x32xf32> to vector<1x32xf32>
    %296 = vector.shape_cast %292 : vector<1x32xf32> to vector<1x1x32xf32>
    tpu.vector_store %arg8[%293, %c4_111, %c32_112], %296 {strides = array<i32>} : memref<8x8x64xf32, #tpu.memory_space<vmem>>, vector<1x1x32xf32>,
    %c8_i32_113 = arith.constant 8 : i32
    %297 = arith.muli %arg0, %c8_i32_113 : i32
    %c5_i32_114 = arith.constant 5 : i32
    %298 = arith.addi %297, %c5_i32_114 : i32
    %299 = arith.index_cast %298 : i32 to index
    %300 = arith.index_cast %169 : i32 to index
    %301 = memref.load %arg2[%299, %300] : memref<8x8xi32, #tpu.memory_space<smem>>
    %302 = vector.extract_strided_slice %239 {offsets = [5, 0], sizes = [1, 32], strides = [1, 1]} : vector<8x32xf32> to vector<1x32xf32>
    %303 = arith.index_cast %301 : i32 to index
    %c5_115 = arith.constant 5 : index
    %c32_116 = arith.constant 32 : index
    %304 = vector.load %arg8[%303, %c5_115, %c32_116] : memref<8x8x64xf32, #tpu.memory_space<vmem>>, vector<1x1x32xf32>
    %305 = vector.shape_cast %304 : vector<1x1x32xf32> to vector<1x32xf32>
    %306 = vector.shape_cast %302 : vector<1x32xf32> to vector<1x1x32xf32>
    tpu.vector_store %arg8[%303, %c5_115, %c32_116], %306 {strides = array<i32>} : memref<8x8x64xf32, #tpu.memory_space<vmem>>, vector<1x1x32xf32>,
    %c8_i32_117 = arith.constant 8 : i32
    %307 = arith.muli %arg0, %c8_i32_117 : i32
    %c6_i32_118 = arith.constant 6 : i32
    %308 = arith.addi %307, %c6_i32_118 : i32
    %309 = arith.index_cast %308 : i32 to index
    %310 = arith.index_cast %169 : i32 to index
    %311 = memref.load %arg2[%309, %310] : memref<8x8xi32, #tpu.memory_space<smem>>
    %312 = vector.extract_strided_slice %239 {offsets = [6, 0], sizes = [1, 32], strides = [1, 1]} : vector<8x32xf32> to vector<1x32xf32>
    %313 = arith.index_cast %311 : i32 to index
    %c6_119 = arith.constant 6 : index
    %c32_120 = arith.constant 32 : index
    %314 = vector.load %arg8[%313, %c6_119, %c32_120] : memref<8x8x64xf32, #tpu.memory_space<vmem>>, vector<1x1x32xf32>
    %315 = vector.shape_cast %314 : vector<1x1x32xf32> to vector<1x32xf32>
    %316 = vector.shape_cast %312 : vector<1x32xf32> to vector<1x1x32xf32>
    tpu.vector_store %arg8[%313, %c6_119, %c32_120], %316 {strides = array<i32>} : memref<8x8x64xf32, #tpu.memory_space<vmem>>, vector<1x1x32xf32>,
    %c8_i32_121 = arith.constant 8 : i32
    %317 = arith.muli %arg0, %c8_i32_121 : i32
    %c7_i32_122 = arith.constant 7 : i32
    %318 = arith.addi %317, %c7_i32_122 : i32
    %319 = arith.index_cast %318 : i32 to index
    %320 = arith.index_cast %169 : i32 to index
    %321 = memref.load %arg2[%319, %320] : memref<8x8xi32, #tpu.memory_space<smem>>
    %322 = vector.extract_strided_slice %239 {offsets = [7, 0], sizes = [1, 32], strides = [1, 1]} : vector<8x32xf32> to vector<1x32xf32>
    %323 = arith.index_cast %321 : i32 to index
    %c7_123 = arith.constant 7 : index
    %c32_124 = arith.constant 32 : index
    %324 = vector.load %arg8[%323, %c7_123, %c32_124] : memref<8x8x64xf32, #tpu.memory_space<vmem>>, vector<1x1x32xf32>
    %325 = vector.shape_cast %324 : vector<1x1x32xf32> to vector<1x32xf32>
    %326 = vector.shape_cast %322 : vector<1x32xf32> to vector<1x1x32xf32>
    tpu.vector_store %arg8[%323, %c7_123, %c32_124], %326 {strides = array<i32>} : memref<8x8x64xf32, #tpu.memory_space<vmem>>, vector<1x1x32xf32>,
    %c4_i32_125 = arith.constant 4 : i32
    %327 = arith.muli %arg1, %c4_i32_125 : i32
    %c2_i32_126 = arith.constant 2 : i32
    %328 = arith.addi %327, %c2_i32_126 : i32
    %c2_127 = arith.constant 2 : index
    %c0_128 = arith.constant 0 : index
    %c0_129 = arith.constant 0 : index
    %329 = vector.load %arg3[%c2_127, %c0_128, %c0_129] : memref<4x8x128xf32, #tpu.memory_space<vmem>>, vector<1x8x128xf32>
    %330 = vector.shape_cast %329 : vector<1x8x128xf32> to vector<8x128xf32>
    %cst_130 = arith.constant dense<0.000000e+00> : vector<8x128xf32>
    %331 = tpu.matmul %204, %3, %cst_130 {dimension_numbers = #tpu.dot_dimension_numbers<[1], [0], [0], [1], [0, 0, 1, 1], [], []>} : vector<8x32xf32>, vector<32x128xf32>, vector<8x128xf32> -> vector<8x128xf32>
    %332 = arith.addf %330, %331 : vector<8x128xf32>
    %333 = vector.extract_strided_slice %332 {offsets = [0, 0], sizes = [8, 32], strides = [1, 1]} : vector<8x128xf32> to vector<8x32xf32>
    %cst_131 = arith.constant 5.000000e-01 : f32
    %334 = vector.broadcast %cst_131 : f32 to vector<8x32xf32>
    %335 = arith.mulf %334, %333 : vector<8x32xf32>
    %336 = math.tanh %335 : vector<8x32xf32>
    %cst_132 = arith.constant 5.000000e-01 : f32
    %337 = vector.broadcast %cst_132 : f32 to vector<8x32xf32>
    %338 = arith.mulf %337, %336 : vector<8x32xf32>
    %cst_133 = arith.constant 5.000000e-01 : f32
    %339 = vector.broadcast %cst_133 : f32 to vector<8x32xf32>
    %340 = arith.addf %338, %339 : vector<8x32xf32>
    %341 = vector.extract_strided_slice %332 {offsets = [0, 32], sizes = [8, 32], strides = [1, 1]} : vector<8x128xf32> to vector<8x32xf32>
    %cst_134 = arith.constant 5.000000e-01 : f32
    %342 = vector.broadcast %cst_134 : f32 to vector<8x32xf32>
    %343 = arith.mulf %342, %341 : vector<8x32xf32>
    %344 = math.tanh %343 : vector<8x32xf32>
    %cst_135 = arith.constant 5.000000e-01 : f32
    %345 = vector.broadcast %cst_135 : f32 to vector<8x32xf32>
    %346 = arith.mulf %345, %344 : vector<8x32xf32>
    %cst_136 = arith.constant 5.000000e-01 : f32
    %347 = vector.broadcast %cst_136 : f32 to vector<8x32xf32>
    %348 = arith.addf %346, %347 : vector<8x32xf32>
    %349 = vector.extract_strided_slice %332 {offsets = [0, 64], sizes = [8, 32], strides = [1, 1]} : vector<8x128xf32> to vector<8x32xf32>
    %350 = math.tanh %349 : vector<8x32xf32>
    %351 = vector.extract_strided_slice %332 {offsets = [0, 96], sizes = [8, 32], strides = [1, 1]} : vector<8x128xf32> to vector<8x32xf32>
    %cst_137 = arith.constant 5.000000e-01 : f32
    %352 = vector.broadcast %cst_137 : f32 to vector<8x32xf32>
    %353 = arith.mulf %352, %351 : vector<8x32xf32>
    %354 = math.tanh %353 : vector<8x32xf32>
    %cst_138 = arith.constant 5.000000e-01 : f32
    %355 = vector.broadcast %cst_138 : f32 to vector<8x32xf32>
    %356 = arith.mulf %355, %354 : vector<8x32xf32>
    %cst_139 = arith.constant 5.000000e-01 : f32
    %357 = vector.broadcast %cst_139 : f32 to vector<8x32xf32>
    %358 = arith.addf %356, %357 : vector<8x32xf32>
    %359 = arith.mulf %348, %202 : vector<8x32xf32>
    %360 = arith.mulf %340, %350 : vector<8x32xf32>
    %361 = arith.addf %359, %360 : vector<8x32xf32>
    %362 = math.tanh %361 : vector<8x32xf32>
    %363 = arith.mulf %358, %362 : vector<8x32xf32>
    %c2_140 = arith.constant 2 : index
    %c0_141 = arith.constant 0 : index
    %c0_142 = arith.constant 0 : index
    %364 = vector.load %arg4[%c2_140, %c0_141, %c0_142] : memref<4x8x128xf32, #tpu.memory_space<vmem>>, vector<1x8x128xf32>
    %365 = vector.shape_cast %364 : vector<1x8x128xf32> to vector<8x128xf32>
    %cst_143 = arith.constant dense<0.000000e+00> : vector<8x128xf32>
    %366 = tpu.matmul %239, %4, %cst_143 {dimension_numbers = #tpu.dot_dimension_numbers<[1], [0], [0], [1], [0, 0, 1, 1], [], []>} : vector<8x32xf32>, vector<32x128xf32>, vector<8x128xf32> -> vector<8x128xf32>
    %367 = arith.addf %365, %366 : vector<8x128xf32>
    %368 = vector.extract_strided_slice %367 {offsets = [0, 0], sizes = [8, 32], strides = [1, 1]} : vector<8x128xf32> to vector<8x32xf32>
    %cst_144 = arith.constant 5.000000e-01 : f32
    %369 = vector.broadcast %cst_144 : f32 to vector<8x32xf32>
    %370 = arith.mulf %369, %368 : vector<8x32xf32>
    %371 = math.tanh %370 : vector<8x32xf32>
    %cst_145 = arith.constant 5.000000e-01 : f32
    %372 = vector.broadcast %cst_145 : f32 to vector<8x32xf32>
    %373 = arith.mulf %372, %371 : vector<8x32xf32>
    %cst_146 = arith.constant 5.000000e-01 : f32
    %374 = vector.broadcast %cst_146 : f32 to vector<8x32xf32>
    %375 = arith.addf %373, %374 : vector<8x32xf32>
    %376 = vector.extract_strided_slice %367 {offsets = [0, 32], sizes = [8, 32], strides = [1, 1]} : vector<8x128xf32> to vector<8x32xf32>
    %cst_147 = arith.constant 5.000000e-01 : f32
    %377 = vector.broadcast %cst_147 : f32 to vector<8x32xf32>
    %378 = arith.mulf %377, %376 : vector<8x32xf32>
    %379 = math.tanh %378 : vector<8x32xf32>
    %cst_148 = arith.constant 5.000000e-01 : f32
    %380 = vector.broadcast %cst_148 : f32 to vector<8x32xf32>
    %381 = arith.mulf %380, %379 : vector<8x32xf32>
    %cst_149 = arith.constant 5.000000e-01 : f32
    %382 = vector.broadcast %cst_149 : f32 to vector<8x32xf32>
    %383 = arith.addf %381, %382 : vector<8x32xf32>
    %384 = vector.extract_strided_slice %367 {offsets = [0, 64], sizes = [8, 32], strides = [1, 1]} : vector<8x128xf32> to vector<8x32xf32>
    %385 = math.tanh %384 : vector<8x32xf32>
    %386 = vector.extract_strided_slice %367 {offsets = [0, 96], sizes = [8, 32], strides = [1, 1]} : vector<8x128xf32> to vector<8x32xf32>
    %cst_150 = arith.constant 5.000000e-01 : f32
    %387 = vector.broadcast %cst_150 : f32 to vector<8x32xf32>
    %388 = arith.mulf %387, %386 : vector<8x32xf32>
    %389 = math.tanh %388 : vector<8x32xf32>
    %cst_151 = arith.constant 5.000000e-01 : f32
    %390 = vector.broadcast %cst_151 : f32 to vector<8x32xf32>
    %391 = arith.mulf %390, %389 : vector<8x32xf32>
    %cst_152 = arith.constant 5.000000e-01 : f32
    %392 = vector.broadcast %cst_152 : f32 to vector<8x32xf32>
    %393 = arith.addf %391, %392 : vector<8x32xf32>
    %394 = arith.mulf %383, %237 : vector<8x32xf32>
    %395 = arith.mulf %375, %385 : vector<8x32xf32>
    %396 = arith.addf %394, %395 : vector<8x32xf32>
    %397 = math.tanh %396 : vector<8x32xf32>
    %398 = arith.mulf %393, %397 : vector<8x32xf32>
    %c2_153 = arith.constant 2 : index
    %c0_154 = arith.constant 0 : index
    %c0_155 = arith.constant 0 : index
    %399 = vector.load %arg7[%c2_153, %c0_154, %c0_155] : memref<4x8x32xf32, #tpu.memory_space<vmem>>, vector<1x8x32xf32>
    %400 = vector.shape_cast %399 : vector<1x8x32xf32> to vector<8x32xf32>
    %401 = vector.shape_cast %398 : vector<8x32xf32> to vector<1x8x32xf32>
    tpu.vector_store %arg7[%c2_153, %c0_154, %c0_155], %401 {strides = array<i32>} : memref<4x8x32xf32, #tpu.memory_space<vmem>>, vector<1x8x32xf32>,
    %402 = arith.index_cast %328 : i32 to index
    %c0_156 = arith.constant 0 : index
    %c0_157 = arith.constant 0 : index
    %403 = vector.load %arg8[%402, %c0_156, %c0_157] : memref<8x8x64xf32, #tpu.memory_space<vmem>>, vector<1x8x32xf32>
    %404 = vector.shape_cast %403 : vector<1x8x32xf32> to vector<8x32xf32>
    %405 = vector.shape_cast %363 : vector<8x32xf32> to vector<1x8x32xf32>
    tpu.vector_store %arg8[%402, %c0_156, %c0_157], %405 {strides = array<i32>} : memref<8x8x64xf32, #tpu.memory_space<vmem>>, vector<1x8x32xf32>,
    %c8_i32_158 = arith.constant 8 : i32
    %406 = arith.muli %arg0, %c8_i32_158 : i32
    %c0_i32_159 = arith.constant 0 : i32
    %407 = arith.addi %406, %c0_i32_159 : i32
    %408 = arith.index_cast %407 : i32 to index
    %409 = arith.index_cast %328 : i32 to index
    %410 = memref.load %arg2[%408, %409] : memref<8x8xi32, #tpu.memory_space<smem>>
    %411 = vector.extract_strided_slice %398 {offsets = [0, 0], sizes = [1, 32], strides = [1, 1]} : vector<8x32xf32> to vector<1x32xf32>
    %412 = arith.index_cast %410 : i32 to index
    %c0_160 = arith.constant 0 : index
    %c32_161 = arith.constant 32 : index
    %413 = vector.load %arg8[%412, %c0_160, %c32_161] : memref<8x8x64xf32, #tpu.memory_space<vmem>>, vector<1x1x32xf32>
    %414 = vector.shape_cast %413 : vector<1x1x32xf32> to vector<1x32xf32>
    %415 = vector.shape_cast %411 : vector<1x32xf32> to vector<1x1x32xf32>
    tpu.vector_store %arg8[%412, %c0_160, %c32_161], %415 {strides = array<i32>} : memref<8x8x64xf32, #tpu.memory_space<vmem>>, vector<1x1x32xf32>,
    %c8_i32_162 = arith.constant 8 : i32
    %416 = arith.muli %arg0, %c8_i32_162 : i32
    %c1_i32_163 = arith.constant 1 : i32
    %417 = arith.addi %416, %c1_i32_163 : i32
    %418 = arith.index_cast %417 : i32 to index
    %419 = arith.index_cast %328 : i32 to index
    %420 = memref.load %arg2[%418, %419] : memref<8x8xi32, #tpu.memory_space<smem>>
    %421 = vector.extract_strided_slice %398 {offsets = [1, 0], sizes = [1, 32], strides = [1, 1]} : vector<8x32xf32> to vector<1x32xf32>
    %422 = arith.index_cast %420 : i32 to index
    %c1_164 = arith.constant 1 : index
    %c32_165 = arith.constant 32 : index
    %423 = vector.load %arg8[%422, %c1_164, %c32_165] : memref<8x8x64xf32, #tpu.memory_space<vmem>>, vector<1x1x32xf32>
    %424 = vector.shape_cast %423 : vector<1x1x32xf32> to vector<1x32xf32>
    %425 = vector.shape_cast %421 : vector<1x32xf32> to vector<1x1x32xf32>
    tpu.vector_store %arg8[%422, %c1_164, %c32_165], %425 {strides = array<i32>} : memref<8x8x64xf32, #tpu.memory_space<vmem>>, vector<1x1x32xf32>,
    %c8_i32_166 = arith.constant 8 : i32
    %426 = arith.muli %arg0, %c8_i32_166 : i32
    %c2_i32_167 = arith.constant 2 : i32
    %427 = arith.addi %426, %c2_i32_167 : i32
    %428 = arith.index_cast %427 : i32 to index
    %429 = arith.index_cast %328 : i32 to index
    %430 = memref.load %arg2[%428, %429] : memref<8x8xi32, #tpu.memory_space<smem>>
    %431 = vector.extract_strided_slice %398 {offsets = [2, 0], sizes = [1, 32], strides = [1, 1]} : vector<8x32xf32> to vector<1x32xf32>
    %432 = arith.index_cast %430 : i32 to index
    %c2_168 = arith.constant 2 : index
    %c32_169 = arith.constant 32 : index
    %433 = vector.load %arg8[%432, %c2_168, %c32_169] : memref<8x8x64xf32, #tpu.memory_space<vmem>>, vector<1x1x32xf32>
    %434 = vector.shape_cast %433 : vector<1x1x32xf32> to vector<1x32xf32>
    %435 = vector.shape_cast %431 : vector<1x32xf32> to vector<1x1x32xf32>
    tpu.vector_store %arg8[%432, %c2_168, %c32_169], %435 {strides = array<i32>} : memref<8x8x64xf32, #tpu.memory_space<vmem>>, vector<1x1x32xf32>,
    %c8_i32_170 = arith.constant 8 : i32
    %436 = arith.muli %arg0, %c8_i32_170 : i32
    %c3_i32_171 = arith.constant 3 : i32
    %437 = arith.addi %436, %c3_i32_171 : i32
    %438 = arith.index_cast %437 : i32 to index
    %439 = arith.index_cast %328 : i32 to index
    %440 = memref.load %arg2[%438, %439] : memref<8x8xi32, #tpu.memory_space<smem>>
    %441 = vector.extract_strided_slice %398 {offsets = [3, 0], sizes = [1, 32], strides = [1, 1]} : vector<8x32xf32> to vector<1x32xf32>
    %442 = arith.index_cast %440 : i32 to index
    %c3_172 = arith.constant 3 : index
    %c32_173 = arith.constant 32 : index
    %443 = vector.load %arg8[%442, %c3_172, %c32_173] : memref<8x8x64xf32, #tpu.memory_space<vmem>>, vector<1x1x32xf32>
    %444 = vector.shape_cast %443 : vector<1x1x32xf32> to vector<1x32xf32>
    %445 = vector.shape_cast %441 : vector<1x32xf32> to vector<1x1x32xf32>
    tpu.vector_store %arg8[%442, %c3_172, %c32_173], %445 {strides = array<i32>} : memref<8x8x64xf32, #tpu.memory_space<vmem>>, vector<1x1x32xf32>,
    %c8_i32_174 = arith.constant 8 : i32
    %446 = arith.muli %arg0, %c8_i32_174 : i32
    %c4_i32_175 = arith.constant 4 : i32
    %447 = arith.addi %446, %c4_i32_175 : i32
    %448 = arith.index_cast %447 : i32 to index
    %449 = arith.index_cast %328 : i32 to index
    %450 = memref.load %arg2[%448, %449] : memref<8x8xi32, #tpu.memory_space<smem>>
    %451 = vector.extract_strided_slice %398 {offsets = [4, 0], sizes = [1, 32], strides = [1, 1]} : vector<8x32xf32> to vector<1x32xf32>
    %452 = arith.index_cast %450 : i32 to index
    %c4_176 = arith.constant 4 : index
    %c32_177 = arith.constant 32 : index
    %453 = vector.load %arg8[%452, %c4_176, %c32_177] : memref<8x8x64xf32, #tpu.memory_space<vmem>>, vector<1x1x32xf32>
    %454 = vector.shape_cast %453 : vector<1x1x32xf32> to vector<1x32xf32>
    %455 = vector.shape_cast %451 : vector<1x32xf32> to vector<1x1x32xf32>
    tpu.vector_store %arg8[%452, %c4_176, %c32_177], %455 {strides = array<i32>} : memref<8x8x64xf32, #tpu.memory_space<vmem>>, vector<1x1x32xf32>,
    %c8_i32_178 = arith.constant 8 : i32
    %456 = arith.muli %arg0, %c8_i32_178 : i32
    %c5_i32_179 = arith.constant 5 : i32
    %457 = arith.addi %456, %c5_i32_179 : i32
    %458 = arith.index_cast %457 : i32 to index
    %459 = arith.index_cast %328 : i32 to index
    %460 = memref.load %arg2[%458, %459] : memref<8x8xi32, #tpu.memory_space<smem>>
    %461 = vector.extract_strided_slice %398 {offsets = [5, 0], sizes = [1, 32], strides = [1, 1]} : vector<8x32xf32> to vector<1x32xf32>
    %462 = arith.index_cast %460 : i32 to index
    %c5_180 = arith.constant 5 : index
    %c32_181 = arith.constant 32 : index
    %463 = vector.load %arg8[%462, %c5_180, %c32_181] : memref<8x8x64xf32, #tpu.memory_space<vmem>>, vector<1x1x32xf32>
    %464 = vector.shape_cast %463 : vector<1x1x32xf32> to vector<1x32xf32>
    %465 = vector.shape_cast %461 : vector<1x32xf32> to vector<1x1x32xf32>
    tpu.vector_store %arg8[%462, %c5_180, %c32_181], %465 {strides = array<i32>} : memref<8x8x64xf32, #tpu.memory_space<vmem>>, vector<1x1x32xf32>,
    %c8_i32_182 = arith.constant 8 : i32
    %466 = arith.muli %arg0, %c8_i32_182 : i32
    %c6_i32_183 = arith.constant 6 : i32
    %467 = arith.addi %466, %c6_i32_183 : i32
    %468 = arith.index_cast %467 : i32 to index
    %469 = arith.index_cast %328 : i32 to index
    %470 = memref.load %arg2[%468, %469] : memref<8x8xi32, #tpu.memory_space<smem>>
    %471 = vector.extract_strided_slice %398 {offsets = [6, 0], sizes = [1, 32], strides = [1, 1]} : vector<8x32xf32> to vector<1x32xf32>
    %472 = arith.index_cast %470 : i32 to index
    %c6_184 = arith.constant 6 : index
    %c32_185 = arith.constant 32 : index
    %473 = vector.load %arg8[%472, %c6_184, %c32_185] : memref<8x8x64xf32, #tpu.memory_space<vmem>>, vector<1x1x32xf32>
    %474 = vector.shape_cast %473 : vector<1x1x32xf32> to vector<1x32xf32>
    %475 = vector.shape_cast %471 : vector<1x32xf32> to vector<1x1x32xf32>
    tpu.vector_store %arg8[%472, %c6_184, %c32_185], %475 {strides = array<i32>} : memref<8x8x64xf32, #tpu.memory_space<vmem>>, vector<1x1x32xf32>,
    %c8_i32_186 = arith.constant 8 : i32
    %476 = arith.muli %arg0, %c8_i32_186 : i32
    %c7_i32_187 = arith.constant 7 : i32
    %477 = arith.addi %476, %c7_i32_187 : i32
    %478 = arith.index_cast %477 : i32 to index
    %479 = arith.index_cast %328 : i32 to index
    %480 = memref.load %arg2[%478, %479] : memref<8x8xi32, #tpu.memory_space<smem>>
    %481 = vector.extract_strided_slice %398 {offsets = [7, 0], sizes = [1, 32], strides = [1, 1]} : vector<8x32xf32> to vector<1x32xf32>
    %482 = arith.index_cast %480 : i32 to index
    %c7_188 = arith.constant 7 : index
    %c32_189 = arith.constant 32 : index
    %483 = vector.load %arg8[%482, %c7_188, %c32_189] : memref<8x8x64xf32, #tpu.memory_space<vmem>>, vector<1x1x32xf32>
    %484 = vector.shape_cast %483 : vector<1x1x32xf32> to vector<1x32xf32>
    %485 = vector.shape_cast %481 : vector<1x32xf32> to vector<1x1x32xf32>
    tpu.vector_store %arg8[%482, %c7_188, %c32_189], %485 {strides = array<i32>} : memref<8x8x64xf32, #tpu.memory_space<vmem>>, vector<1x1x32xf32>,
    %c4_i32_190 = arith.constant 4 : i32
    %486 = arith.muli %arg1, %c4_i32_190 : i32
    %c3_i32_191 = arith.constant 3 : i32
    %487 = arith.addi %486, %c3_i32_191 : i32
    %c3_192 = arith.constant 3 : index
    %c0_193 = arith.constant 0 : index
    %c0_194 = arith.constant 0 : index
    %488 = vector.load %arg3[%c3_192, %c0_193, %c0_194] : memref<4x8x128xf32, #tpu.memory_space<vmem>>, vector<1x8x128xf32>
    %489 = vector.shape_cast %488 : vector<1x8x128xf32> to vector<8x128xf32>
    %cst_195 = arith.constant dense<0.000000e+00> : vector<8x128xf32>
    %490 = tpu.matmul %363, %3, %cst_195 {dimension_numbers = #tpu.dot_dimension_numbers<[1], [0], [0], [1], [0, 0, 1, 1], [], []>} : vector<8x32xf32>, vector<32x128xf32>, vector<8x128xf32> -> vector<8x128xf32>
    %491 = arith.addf %489, %490 : vector<8x128xf32>
    %492 = vector.extract_strided_slice %491 {offsets = [0, 0], sizes = [8, 32], strides = [1, 1]} : vector<8x128xf32> to vector<8x32xf32>
    %cst_196 = arith.constant 5.000000e-01 : f32
    %493 = vector.broadcast %cst_196 : f32 to vector<8x32xf32>
    %494 = arith.mulf %493, %492 : vector<8x32xf32>
    %495 = math.tanh %494 : vector<8x32xf32>
    %cst_197 = arith.constant 5.000000e-01 : f32
    %496 = vector.broadcast %cst_197 : f32 to vector<8x32xf32>
    %497 = arith.mulf %496, %495 : vector<8x32xf32>
    %cst_198 = arith.constant 5.000000e-01 : f32
    %498 = vector.broadcast %cst_198 : f32 to vector<8x32xf32>
    %499 = arith.addf %497, %498 : vector<8x32xf32>
    %500 = vector.extract_strided_slice %491 {offsets = [0, 32], sizes = [8, 32], strides = [1, 1]} : vector<8x128xf32> to vector<8x32xf32>
    %cst_199 = arith.constant 5.000000e-01 : f32
    %501 = vector.broadcast %cst_199 : f32 to vector<8x32xf32>
    %502 = arith.mulf %501, %500 : vector<8x32xf32>
    %503 = math.tanh %502 : vector<8x32xf32>
    %cst_200 = arith.constant 5.000000e-01 : f32
    %504 = vector.broadcast %cst_200 : f32 to vector<8x32xf32>
    %505 = arith.mulf %504, %503 : vector<8x32xf32>
    %cst_201 = arith.constant 5.000000e-01 : f32
    %506 = vector.broadcast %cst_201 : f32 to vector<8x32xf32>
    %507 = arith.addf %505, %506 : vector<8x32xf32>
    %508 = vector.extract_strided_slice %491 {offsets = [0, 64], sizes = [8, 32], strides = [1, 1]} : vector<8x128xf32> to vector<8x32xf32>
    %509 = math.tanh %508 : vector<8x32xf32>
    %510 = vector.extract_strided_slice %491 {offsets = [0, 96], sizes = [8, 32], strides = [1, 1]} : vector<8x128xf32> to vector<8x32xf32>
    %cst_202 = arith.constant 5.000000e-01 : f32
    %511 = vector.broadcast %cst_202 : f32 to vector<8x32xf32>
    %512 = arith.mulf %511, %510 : vector<8x32xf32>
    %513 = math.tanh %512 : vector<8x32xf32>
    %cst_203 = arith.constant 5.000000e-01 : f32
    %514 = vector.broadcast %cst_203 : f32 to vector<8x32xf32>
    %515 = arith.mulf %514, %513 : vector<8x32xf32>
    %cst_204 = arith.constant 5.000000e-01 : f32
    %516 = vector.broadcast %cst_204 : f32 to vector<8x32xf32>
    %517 = arith.addf %515, %516 : vector<8x32xf32>
    %518 = arith.mulf %507, %361 : vector<8x32xf32>
    %519 = arith.mulf %499, %509 : vector<8x32xf32>
    %520 = arith.addf %518, %519 : vector<8x32xf32>
    %521 = math.tanh %520 : vector<8x32xf32>
    %522 = arith.mulf %517, %521 : vector<8x32xf32>
    %c3_205 = arith.constant 3 : index
    %c0_206 = arith.constant 0 : index
    %c0_207 = arith.constant 0 : index
    %523 = vector.load %arg4[%c3_205, %c0_206, %c0_207] : memref<4x8x128xf32, #tpu.memory_space<vmem>>, vector<1x8x128xf32>
    %524 = vector.shape_cast %523 : vector<1x8x128xf32> to vector<8x128xf32>
    %cst_208 = arith.constant dense<0.000000e+00> : vector<8x128xf32>
    %525 = tpu.matmul %398, %4, %cst_208 {dimension_numbers = #tpu.dot_dimension_numbers<[1], [0], [0], [1], [0, 0, 1, 1], [], []>} : vector<8x32xf32>, vector<32x128xf32>, vector<8x128xf32> -> vector<8x128xf32>
    %526 = arith.addf %524, %525 : vector<8x128xf32>
    %527 = vector.extract_strided_slice %526 {offsets = [0, 0], sizes = [8, 32], strides = [1, 1]} : vector<8x128xf32> to vector<8x32xf32>
    %cst_209 = arith.constant 5.000000e-01 : f32
    %528 = vector.broadcast %cst_209 : f32 to vector<8x32xf32>
    %529 = arith.mulf %528, %527 : vector<8x32xf32>
    %530 = math.tanh %529 : vector<8x32xf32>
    %cst_210 = arith.constant 5.000000e-01 : f32
    %531 = vector.broadcast %cst_210 : f32 to vector<8x32xf32>
    %532 = arith.mulf %531, %530 : vector<8x32xf32>
    %cst_211 = arith.constant 5.000000e-01 : f32
    %533 = vector.broadcast %cst_211 : f32 to vector<8x32xf32>
    %534 = arith.addf %532, %533 : vector<8x32xf32>
    %535 = vector.extract_strided_slice %526 {offsets = [0, 32], sizes = [8, 32], strides = [1, 1]} : vector<8x128xf32> to vector<8x32xf32>
    %cst_212 = arith.constant 5.000000e-01 : f32
    %536 = vector.broadcast %cst_212 : f32 to vector<8x32xf32>
    %537 = arith.mulf %536, %535 : vector<8x32xf32>
    %538 = math.tanh %537 : vector<8x32xf32>
    %cst_213 = arith.constant 5.000000e-01 : f32
    %539 = vector.broadcast %cst_213 : f32 to vector<8x32xf32>
    %540 = arith.mulf %539, %538 : vector<8x32xf32>
    %cst_214 = arith.constant 5.000000e-01 : f32
    %541 = vector.broadcast %cst_214 : f32 to vector<8x32xf32>
    %542 = arith.addf %540, %541 : vector<8x32xf32>
    %543 = vector.extract_strided_slice %526 {offsets = [0, 64], sizes = [8, 32], strides = [1, 1]} : vector<8x128xf32> to vector<8x32xf32>
    %544 = math.tanh %543 : vector<8x32xf32>
    %545 = vector.extract_strided_slice %526 {offsets = [0, 96], sizes = [8, 32], strides = [1, 1]} : vector<8x128xf32> to vector<8x32xf32>
    %cst_215 = arith.constant 5.000000e-01 : f32
    %546 = vector.broadcast %cst_215 : f32 to vector<8x32xf32>
    %547 = arith.mulf %546, %545 : vector<8x32xf32>
    %548 = math.tanh %547 : vector<8x32xf32>
    %cst_216 = arith.constant 5.000000e-01 : f32
    %549 = vector.broadcast %cst_216 : f32 to vector<8x32xf32>
    %550 = arith.mulf %549, %548 : vector<8x32xf32>
    %cst_217 = arith.constant 5.000000e-01 : f32
    %551 = vector.broadcast %cst_217 : f32 to vector<8x32xf32>
    %552 = arith.addf %550, %551 : vector<8x32xf32>
    %553 = arith.mulf %542, %396 : vector<8x32xf32>
    %554 = arith.mulf %534, %544 : vector<8x32xf32>
    %555 = arith.addf %553, %554 : vector<8x32xf32>
    %556 = math.tanh %555 : vector<8x32xf32>
    %557 = arith.mulf %552, %556 : vector<8x32xf32>
    %c3_218 = arith.constant 3 : index
    %c0_219 = arith.constant 0 : index
    %c0_220 = arith.constant 0 : index
    %558 = vector.load %arg7[%c3_218, %c0_219, %c0_220] : memref<4x8x32xf32, #tpu.memory_space<vmem>>, vector<1x8x32xf32>
    %559 = vector.shape_cast %558 : vector<1x8x32xf32> to vector<8x32xf32>
    %560 = vector.shape_cast %557 : vector<8x32xf32> to vector<1x8x32xf32>
    tpu.vector_store %arg7[%c3_218, %c0_219, %c0_220], %560 {strides = array<i32>} : memref<4x8x32xf32, #tpu.memory_space<vmem>>, vector<1x8x32xf32>,
    %561 = arith.index_cast %487 : i32 to index
    %c0_221 = arith.constant 0 : index
    %c0_222 = arith.constant 0 : index
    %562 = vector.load %arg8[%561, %c0_221, %c0_222] : memref<8x8x64xf32, #tpu.memory_space<vmem>>, vector<1x8x32xf32>
    %563 = vector.shape_cast %562 : vector<1x8x32xf32> to vector<8x32xf32>
    %564 = vector.shape_cast %522 : vector<8x32xf32> to vector<1x8x32xf32>
    tpu.vector_store %arg8[%561, %c0_221, %c0_222], %564 {strides = array<i32>} : memref<8x8x64xf32, #tpu.memory_space<vmem>>, vector<1x8x32xf32>,
    %c8_i32_223 = arith.constant 8 : i32
    %565 = arith.muli %arg0, %c8_i32_223 : i32
    %c0_i32_224 = arith.constant 0 : i32
    %566 = arith.addi %565, %c0_i32_224 : i32
    %567 = arith.index_cast %566 : i32 to index
    %568 = arith.index_cast %487 : i32 to index
    %569 = memref.load %arg2[%567, %568] : memref<8x8xi32, #tpu.memory_space<smem>>
    %570 = vector.extract_strided_slice %557 {offsets = [0, 0], sizes = [1, 32], strides = [1, 1]} : vector<8x32xf32> to vector<1x32xf32>
    %571 = arith.index_cast %569 : i32 to index
    %c0_225 = arith.constant 0 : index
    %c32_226 = arith.constant 32 : index
    %572 = vector.load %arg8[%571, %c0_225, %c32_226] : memref<8x8x64xf32, #tpu.memory_space<vmem>>, vector<1x1x32xf32>
    %573 = vector.shape_cast %572 : vector<1x1x32xf32> to vector<1x32xf32>
    %574 = vector.shape_cast %570 : vector<1x32xf32> to vector<1x1x32xf32>
    tpu.vector_store %arg8[%571, %c0_225, %c32_226], %574 {strides = array<i32>} : memref<8x8x64xf32, #tpu.memory_space<vmem>>, vector<1x1x32xf32>,
    %c8_i32_227 = arith.constant 8 : i32
    %575 = arith.muli %arg0, %c8_i32_227 : i32
    %c1_i32_228 = arith.constant 1 : i32
    %576 = arith.addi %575, %c1_i32_228 : i32
    %577 = arith.index_cast %576 : i32 to index
    %578 = arith.index_cast %487 : i32 to index
    %579 = memref.load %arg2[%577, %578] : memref<8x8xi32, #tpu.memory_space<smem>>
    %580 = vector.extract_strided_slice %557 {offsets = [1, 0], sizes = [1, 32], strides = [1, 1]} : vector<8x32xf32> to vector<1x32xf32>
    %581 = arith.index_cast %579 : i32 to index
    %c1_229 = arith.constant 1 : index
    %c32_230 = arith.constant 32 : index
    %582 = vector.load %arg8[%581, %c1_229, %c32_230] : memref<8x8x64xf32, #tpu.memory_space<vmem>>, vector<1x1x32xf32>
    %583 = vector.shape_cast %582 : vector<1x1x32xf32> to vector<1x32xf32>
    %584 = vector.shape_cast %580 : vector<1x32xf32> to vector<1x1x32xf32>
    tpu.vector_store %arg8[%581, %c1_229, %c32_230], %584 {strides = array<i32>} : memref<8x8x64xf32, #tpu.memory_space<vmem>>, vector<1x1x32xf32>,
    %c8_i32_231 = arith.constant 8 : i32
    %585 = arith.muli %arg0, %c8_i32_231 : i32
    %c2_i32_232 = arith.constant 2 : i32
    %586 = arith.addi %585, %c2_i32_232 : i32
    %587 = arith.index_cast %586 : i32 to index
    %588 = arith.index_cast %487 : i32 to index
    %589 = memref.load %arg2[%587, %588] : memref<8x8xi32, #tpu.memory_space<smem>>
    %590 = vector.extract_strided_slice %557 {offsets = [2, 0], sizes = [1, 32], strides = [1, 1]} : vector<8x32xf32> to vector<1x32xf32>
    %591 = arith.index_cast %589 : i32 to index
    %c2_233 = arith.constant 2 : index
    %c32_234 = arith.constant 32 : index
    %592 = vector.load %arg8[%591, %c2_233, %c32_234] : memref<8x8x64xf32, #tpu.memory_space<vmem>>, vector<1x1x32xf32>
    %593 = vector.shape_cast %592 : vector<1x1x32xf32> to vector<1x32xf32>
    %594 = vector.shape_cast %590 : vector<1x32xf32> to vector<1x1x32xf32>
    tpu.vector_store %arg8[%591, %c2_233, %c32_234], %594 {strides = array<i32>} : memref<8x8x64xf32, #tpu.memory_space<vmem>>, vector<1x1x32xf32>,
    %c8_i32_235 = arith.constant 8 : i32
    %595 = arith.muli %arg0, %c8_i32_235 : i32
    %c3_i32_236 = arith.constant 3 : i32
    %596 = arith.addi %595, %c3_i32_236 : i32
    %597 = arith.index_cast %596 : i32 to index
    %598 = arith.index_cast %487 : i32 to index
    %599 = memref.load %arg2[%597, %598] : memref<8x8xi32, #tpu.memory_space<smem>>
    %600 = vector.extract_strided_slice %557 {offsets = [3, 0], sizes = [1, 32], strides = [1, 1]} : vector<8x32xf32> to vector<1x32xf32>
    %601 = arith.index_cast %599 : i32 to index
    %c3_237 = arith.constant 3 : index
    %c32_238 = arith.constant 32 : index
    %602 = vector.load %arg8[%601, %c3_237, %c32_238] : memref<8x8x64xf32, #tpu.memory_space<vmem>>, vector<1x1x32xf32>
    %603 = vector.shape_cast %602 : vector<1x1x32xf32> to vector<1x32xf32>
    %604 = vector.shape_cast %600 : vector<1x32xf32> to vector<1x1x32xf32>
    tpu.vector_store %arg8[%601, %c3_237, %c32_238], %604 {strides = array<i32>} : memref<8x8x64xf32, #tpu.memory_space<vmem>>, vector<1x1x32xf32>,
    %c8_i32_239 = arith.constant 8 : i32
    %605 = arith.muli %arg0, %c8_i32_239 : i32
    %c4_i32_240 = arith.constant 4 : i32
    %606 = arith.addi %605, %c4_i32_240 : i32
    %607 = arith.index_cast %606 : i32 to index
    %608 = arith.index_cast %487 : i32 to index
    %609 = memref.load %arg2[%607, %608] : memref<8x8xi32, #tpu.memory_space<smem>>
    %610 = vector.extract_strided_slice %557 {offsets = [4, 0], sizes = [1, 32], strides = [1, 1]} : vector<8x32xf32> to vector<1x32xf32>
    %611 = arith.index_cast %609 : i32 to index
    %c4_241 = arith.constant 4 : index
    %c32_242 = arith.constant 32 : index
    %612 = vector.load %arg8[%611, %c4_241, %c32_242] : memref<8x8x64xf32, #tpu.memory_space<vmem>>, vector<1x1x32xf32>
    %613 = vector.shape_cast %612 : vector<1x1x32xf32> to vector<1x32xf32>
    %614 = vector.shape_cast %610 : vector<1x32xf32> to vector<1x1x32xf32>
    tpu.vector_store %arg8[%611, %c4_241, %c32_242], %614 {strides = array<i32>} : memref<8x8x64xf32, #tpu.memory_space<vmem>>, vector<1x1x32xf32>,
    %c8_i32_243 = arith.constant 8 : i32
    %615 = arith.muli %arg0, %c8_i32_243 : i32
    %c5_i32_244 = arith.constant 5 : i32
    %616 = arith.addi %615, %c5_i32_244 : i32
    %617 = arith.index_cast %616 : i32 to index
    %618 = arith.index_cast %487 : i32 to index
    %619 = memref.load %arg2[%617, %618] : memref<8x8xi32, #tpu.memory_space<smem>>
    %620 = vector.extract_strided_slice %557 {offsets = [5, 0], sizes = [1, 32], strides = [1, 1]} : vector<8x32xf32> to vector<1x32xf32>
    %621 = arith.index_cast %619 : i32 to index
    %c5_245 = arith.constant 5 : index
    %c32_246 = arith.constant 32 : index
    %622 = vector.load %arg8[%621, %c5_245, %c32_246] : memref<8x8x64xf32, #tpu.memory_space<vmem>>, vector<1x1x32xf32>
    %623 = vector.shape_cast %622 : vector<1x1x32xf32> to vector<1x32xf32>
    %624 = vector.shape_cast %620 : vector<1x32xf32> to vector<1x1x32xf32>
    tpu.vector_store %arg8[%621, %c5_245, %c32_246], %624 {strides = array<i32>} : memref<8x8x64xf32, #tpu.memory_space<vmem>>, vector<1x1x32xf32>,
    %c8_i32_247 = arith.constant 8 : i32
    %625 = arith.muli %arg0, %c8_i32_247 : i32
    %c6_i32_248 = arith.constant 6 : i32
    %626 = arith.addi %625, %c6_i32_248 : i32
    %627 = arith.index_cast %626 : i32 to index
    %628 = arith.index_cast %487 : i32 to index
    %629 = memref.load %arg2[%627, %628] : memref<8x8xi32, #tpu.memory_space<smem>>
    %630 = vector.extract_strided_slice %557 {offsets = [6, 0], sizes = [1, 32], strides = [1, 1]} : vector<8x32xf32> to vector<1x32xf32>
    %631 = arith.index_cast %629 : i32 to index
    %c6_249 = arith.constant 6 : index
    %c32_250 = arith.constant 32 : index
    %632 = vector.load %arg8[%631, %c6_249, %c32_250] : memref<8x8x64xf32, #tpu.memory_space<vmem>>, vector<1x1x32xf32>
    %633 = vector.shape_cast %632 : vector<1x1x32xf32> to vector<1x32xf32>
    %634 = vector.shape_cast %630 : vector<1x32xf32> to vector<1x1x32xf32>
    tpu.vector_store %arg8[%631, %c6_249, %c32_250], %634 {strides = array<i32>} : memref<8x8x64xf32, #tpu.memory_space<vmem>>, vector<1x1x32xf32>,
    %c8_i32_251 = arith.constant 8 : i32
    %635 = arith.muli %arg0, %c8_i32_251 : i32
    %c7_i32_252 = arith.constant 7 : i32
    %636 = arith.addi %635, %c7_i32_252 : i32
    %637 = arith.index_cast %636 : i32 to index
    %638 = arith.index_cast %487 : i32 to index
    %639 = memref.load %arg2[%637, %638] : memref<8x8xi32, #tpu.memory_space<smem>>
    %640 = vector.extract_strided_slice %557 {offsets = [7, 0], sizes = [1, 32], strides = [1, 1]} : vector<8x32xf32> to vector<1x32xf32>
    %641 = arith.index_cast %639 : i32 to index
    %c7_253 = arith.constant 7 : index
    %c32_254 = arith.constant 32 : index
    %642 = vector.load %arg8[%641, %c7_253, %c32_254] : memref<8x8x64xf32, #tpu.memory_space<vmem>>, vector<1x1x32xf32>
    %643 = vector.shape_cast %642 : vector<1x1x32xf32> to vector<1x32xf32>
    %644 = vector.shape_cast %640 : vector<1x32xf32> to vector<1x1x32xf32>
    tpu.vector_store %arg8[%641, %c7_253, %c32_254], %644 {strides = array<i32>} : memref<8x8x64xf32, #tpu.memory_space<vmem>>, vector<1x1x32xf32>,
    %c0_255 = arith.constant 0 : index
    %c0_256 = arith.constant 0 : index
    %645 = vector.load %arg9[%c0_255, %c0_256] : memref<8x32xf32, #tpu.memory_space<vmem>>, vector<8x32xf32>
    tpu.vector_store %arg9[%c0_255, %c0_256], %522 {strides = array<i32>} : memref<8x32xf32, #tpu.memory_space<vmem>>, vector<8x32xf32>,
    %c0_257 = arith.constant 0 : index
    %c0_258 = arith.constant 0 : index
    %646 = vector.load %arg10[%c0_257, %c0_258] : memref<8x32xf32, #tpu.memory_space<vmem>>, vector<8x32xf32>
    tpu.vector_store %arg10[%c0_257, %c0_258], %520 {strides = array<i32>} : memref<8x32xf32, #tpu.memory_space<vmem>>, vector<8x32xf32>,
    %c0_259 = arith.constant 0 : index
    %c0_260 = arith.constant 0 : index
    %647 = vector.load %arg11[%c0_259, %c0_260] : memref<8x32xf32, #tpu.memory_space<vmem>>, vector<8x32xf32>
    tpu.vector_store %arg11[%c0_259, %c0_260], %557 {strides = array<i32>} : memref<8x32xf32, #tpu.memory_space<vmem>>, vector<8x32xf32>,
    %c0_261 = arith.constant 0 : index
    %c0_262 = arith.constant 0 : index
    %648 = vector.load %arg12[%c0_261, %c0_262] : memref<8x32xf32, #tpu.memory_space<vmem>>, vector<8x32xf32>
    tpu.vector_store %arg12[%c0_261, %c0_262], %555 {strides = array<i32>} : memref<8x32xf32, #tpu.memory_space<vmem>>, vector<8x32xf32>,
    return
  }
  func.func @transform_0(%arg0: i32, %arg1: i32, %arg2: memref<8x8xi32, #tpu.memory_space<smem>>) -> (i32, i32, i32) {
    %c0_i32 = arith.constant 0 : i32
    %c0_i32_0 = arith.constant 0 : i32
    return %arg1, %arg0, %c0_i32 : i32, i32, i32
  }
  func.func @transform_1(%arg0: i32, %arg1: i32, %arg2: memref<8x8xi32, #tpu.memory_space<smem>>) -> (i32, i32, i32) {
    %c0_i32 = arith.constant 0 : i32
    %c0_i32_0 = arith.constant 0 : i32
    return %arg1, %arg0, %c0_i32 : i32, i32, i32
  }
  func.func @transform_2(%arg0: i32, %arg1: i32, %arg2: memref<8x8xi32, #tpu.memory_space<smem>>) -> (i32, i32) {
    %c0_i32 = arith.constant 0 : i32
    %c0_i32_0 = arith.constant 0 : i32
    %c0_i32_1 = arith.constant 0 : i32
    return %c0_i32, %c0_i32_0 : i32, i32
  }
  func.func @transform_3(%arg0: i32, %arg1: i32, %arg2: memref<8x8xi32, #tpu.memory_space<smem>>) -> (i32, i32) {
    %c0_i32 = arith.constant 0 : i32
    %c0_i32_0 = arith.constant 0 : i32
    %c0_i32_1 = arith.constant 0 : i32
    return %c0_i32, %c0_i32_0 : i32, i32
  }
  func.func @transform_4(%arg0: i32, %arg1: i32, %arg2: memref<8x8xi32, #tpu.memory_space<smem>>) -> (i32, i32, i32) {
    %c0_i32 = arith.constant 0 : i32
    %c0_i32_0 = arith.constant 0 : i32
    return %arg1, %arg0, %c0_i32 : i32, i32, i32
  }
  func.func @transform_5(%arg0: i32, %arg1: i32, %arg2: memref<8x8xi32, #tpu.memory_space<smem>>) -> (i32, i32, i32) {
    %c0_i32 = arith.constant 0 : i32
    %c0_i32_0 = arith.constant 0 : i32
    %c0_i32_1 = arith.constant 0 : i32
    return %c0_i32, %arg0, %c0_i32_0 : i32, i32, i32
  }
}

</mosaic_0001>

<llo_original>
// kernel: gaz_bilstm_forward.1
$region0: #{gaz_bilstm_forward.1}
  #allocation0 [shape = 'u32[]', space=smem, size = 0x4, offset = 0x4, fixed_abs, tag = 'smem constant byte address 0x4 - core index']
  #allocation1 [shape = 'u32[72,128]{1,0:T(1,128)}', space=vmem, size = 0x9000, scoped, tag = 'internal scratch']
  #allocation2 [shape = 'f32[8,32]{1,0:T(8,128)}', space=vmem, size = 0x1000, scoped, tag = 'scratch operand']
  #allocation3 [shape = 'f32[8,32]{1,0:T(8,128)}', space=vmem, size = 0x1000, scoped, tag = 'scratch operand']
  #allocation4 [shape = 'f32[8,32]{1,0:T(8,128)}', space=vmem, size = 0x1000, scoped, tag = 'scratch operand']
  #allocation5 [shape = 'f32[8,32]{1,0:T(8,128)}', space=vmem, size = 0x1000, scoped, tag = 'scratch operand']
  #allocation6 [shape = 's32[1]{0}', space=sflag, size = 0x4, scoped, tag = 'scoped memory for gaz_bilstm_forward.1']
  #allocation7 [shape = 'u8[4096]{0}', space=smem, size = 0x1000, scoped, tag = 'prefetched SMEM operand 0']
  %s0 = inlined_call_operand.vmem [shape: s32[8,8], index: 0, kind: input, shape index: {}]
  %s1 = inlined_call_operand.vmem [shape: f32[8,8,128], index: 1, kind: input, shape index: {}]
  %s2 = inlined_call_operand.vmem [shape: f32[8,8,128], index: 2, kind: input, shape index: {}]
  %s3 = inlined_call_operand.vmem [shape: f32[32,128], index: 3, kind: input, shape index: {}]
  %s4 = inlined_call_operand.vmem [shape: f32[32,128], index: 4, kind: input, shape index: {}]
  %s5 = inlined_call_operand.vmem [shape: f32[8,8,32], index: 5, kind: output, shape index: {0}]
  %s6 = inlined_call_operand.vmem [shape: f32[8,8,64], index: 6, kind: output, shape index: {1}]
  %7 = xla_tuple %s5, %s6
  %s8 = sld [smem:[#allocation0]]
  $region61: #{gaz_bilstm_forward.1} parent=0
    _
  %s10 = ssub.s32 1, %s8
  %s11 = scalar_select 0, %s10, %s8
  %s13 = sshll.u32 %s0, 4
  %s14 = int_to_ptr.vmem [resolvable:$true] %s13
  %16 = dma.vmem_to_smem %s14, 128, [#allocation7], [#allocation6]
  %18 = dma.done [#allocation6], 128
  %19 = sfence
  loop: start=0, step=1, limit=4
  $region2: #{gaz_bilstm_forward.1} parent=0 // loop_pre_header
    _
  $region3: #{gaz_bilstm_forward.1} parent=0 // loop_header
    %s21 = sphi 0, %s25
    %p22 = scmp.ge.s32.totalorder %s21, 4
    %s28 = sphi 0, %s40
    %s29 = sphi 0, %s36
    %s30 = sphi 0, %s28
    %s31 = sphi 0, %s29
    %s32 = sphi 0, %s30
    %s33 = sphi 0, %s31
    %s45 = sphi 0, %s47
    %s48 = sphi 0, %s45
    %s49 = sphi 0, %s48
    %s65 = sphi 0, %s49
    %s73 = sphi 0, %s75
    %s76 = sphi 0, %s73
    %s77 = sphi 0, %s76
    %s93 = sphi 0, %s77
    %s97 = sphi 0, %s97
    %s99 = sphi 0, %s97
    %s100 = sphi 0, %s99
    %s114 = sphi 0, %s100
    %s118 = sphi 0, %s118
    %s120 = sphi 0, %s118
    %s121 = sphi 0, %s120
    %s135 = sphi 0, %s121
    %s143 = sphi 0, %s145
    %s146 = sphi 0, %s143
    %s147 = sphi 0, %s146
    %s163 = sphi 0, %s147
    %s169 = sphi 0, %s171
    %s172 = sphi 0, %s169
    %s173 = sphi 0, %s172
    %s189 = sphi 0, %s173
  $region4: #{gaz_bilstm_forward.1} parent=0 // loop_header_branch
    %24 = sbr.rel (%p22) target = $region8
  $region5: #{gaz_bilstm_forward.1} parent=0 // loop_body
    %s26 = ssub.s32 %s21, 1
    %s27 = ssub.s32 %s21, 2
    %s34 = sadd.s32 1, %s29
    %p35 = scmp.ge.s32.totalorder %s34, 2
    %s36 = scalar_select %p35, 0, %s34
    %s37 = sadd.s32 1, %s28
    %s38 = scalar_select %p35, %s37, %s28
    %p39 = scmp.ge.s32.totalorder %s38, 1
    %s40 = scalar_select %p39, 0, %s38
    %s41 = ssub.s32 %s29, %s36
    %s42 = ssub.s32 %s28, %s40
    %s43 = sor.u32 %s41, %s42
    %p44 = scmp.eq.s32.totalorder %s43, 0
    %s46 = sadd.s32 %s45, 1
    %s47 = scalar_select %p44, %s45, %s46
    %p50 = pneg %p44
    %p51 = scmp.eq.s32.totalorder %s21, 1
    %p52 = por %p50, %p51
    %p53 = scmp.ne.s32.totalorder %s45, %s48
    %p54 = scmp.eq.s32.totalorder %s21, 0
    %p55 = por %p53, %p54
    %p56 = scmp.ne.s32.totalorder %s45, %s48
    %p57 = scmp.eq.s32.totalorder %s26, 1
    %p58 = por %p56, %p57
    %p59 = scmp.ne.s32.totalorder %s48, %s49
    %p60 = scmp.eq.s32.totalorder %s26, 0
    %p61 = por %p59, %p60
    %p62 = scmp.ne.s32.totalorder %s48, %s49
    %p63 = scmp.eq.s32.totalorder %s27, 1
    %p64 = por %p62, %p63
    %p66 = scmp.ne.s32.totalorder %s49, %s65
    %p67 = scmp.eq.s32.totalorder %s27, 0
    %p68 = por %p66, %p67
    %s69 = ssub.s32 %s29, %s36
    %s70 = ssub.s32 %s28, %s40
    %s71 = sor.u32 %s69, %s70
    %p72 = scmp.eq.s32.totalorder %s71, 0
    %s74 = sadd.s32 %s73, 1
    %s75 = scalar_select %p72, %s73, %s74
    %p78 = pneg %p72
    %p79 = scmp.eq.s32.totalorder %s21, 1
    %p80 = por %p78, %p79
    %p81 = scmp.ne.s32.totalorder %s73, %s76
    %p82 = scmp.eq.s32.totalorder %s21, 0
    %p83 = por %p81, %p82
    %p84 = scmp.ne.s32.totalorder %s73, %s76
    %p85 = scmp.eq.s32.totalorder %s26, 1
    %p86 = por %p84, %p85
    %p87 = scmp.ne.s32.totalorder %s76, %s77
    %p88 = scmp.eq.s32.totalorder %s26, 0
    %p89 = por %p87, %p88
    %p90 = scmp.ne.s32.totalorder %s76, %s77
    %p91 = scmp.eq.s32.totalorder %s27, 1
    %p92 = por %p90, %p91
    %p94 = scmp.ne.s32.totalorder %s77, %s93
    %p95 = scmp.eq.s32.totalorder %s27, 0
    %p96 = por %p94, %p95
    %s98 = sadd.s32 %s97, 1
    %p101 = scmp.eq.s32.totalorder %s21, 1
    %p102 = scmp.ne.s32.totalorder %s97, %s99
    %p103 = scmp.eq.s32.totalorder %s21, 0
    %p104 = por %p102, %p103
    %p105 = scmp.ne.s32.totalorder %s97, %s99
    %p106 = scmp.eq.s32.totalorder %s26, 1
    %p107 = por %p105, %p106
    %p108 = scmp.ne.s32.totalorder %s99, %s100
    %p109 = scmp.eq.s32.totalorder %s26, 0
    %p110 = por %p108, %p109
    %p111 = scmp.ne.s32.totalorder %s99, %s100
    %p112 = scmp.eq.s32.totalorder %s27, 1
    %p113 = por %p111, %p112
    %p115 = scmp.ne.s32.totalorder %s100, %s114
    %p116 = scmp.eq.s32.totalorder %s27, 0
    %p117 = por %p115, %p116
    %s119 = sadd.s32 %s118, 1
    %p122 = scmp.eq.s32.totalorder %s21, 1
    %p123 = scmp.ne.s32.totalorder %s118, %s120
    %p124 = scmp.eq.s32.totalorder %s21, 0
    %p125 = por %p123, %p124
    %p126 = scmp.ne.s32.totalorder %s118, %s120
    %p127 = scmp.eq.s32.totalorder %s26, 1
    %p128 = por %p126, %p127
    %p129 = scmp.ne.s32.totalorder %s120, %s121
    %p130 = scmp.eq.s32.totalorder %s26, 0
    %p131 = por %p129, %p130
    %p132 = scmp.ne.s32.totalorder %s120, %s121
    %p133 = scmp.eq.s32.totalorder %s27, 1
    %p134 = por %p132, %p133
    %p136 = scmp.ne.s32.totalorder %s121, %s135
    %p137 = scmp.eq.s32.totalorder %s27, 0
    %p138 = por %p136, %p137
    %s139 = ssub.s32 %s29, %s36
    %s140 = ssub.s32 %s28, %s40
    %s141 = sor.u32 %s139, %s140
    %p142 = scmp.eq.s32.totalorder %s141, 0
    %s144 = sadd.s32 %s143, 1
    %s145 = scalar_select %p142, %s143, %s144
    %p148 = pneg %p142
    %p149 = scmp.eq.s32.totalorder %s21, 1
    %p150 = por %p148, %p149
    %p151 = scmp.ne.s32.totalorder %s143, %s146
    %p152 = scmp.eq.s32.totalorder %s21, 0
    %p153 = por %p151, %p152
    %p154 = scmp.ne.s32.totalorder %s143, %s146
    %p155 = scmp.eq.s32.totalorder %s26, 1
    %p156 = por %p154, %p155
    %p157 = scmp.ne.s32.totalorder %s146, %s147
    %p158 = scmp.eq.s32.totalorder %s26, 0
    %p159 = por %p157, %p158
    %p160 = scmp.ne.s32.totalorder %s146, %s147
    %p161 = scmp.eq.s32.totalorder %s27, 1
    %p162 = por %p160, %p161
    %p164 = scmp.ne.s32.totalorder %s147, %s163
    %p165 = scmp.eq.s32.totalorder %s27, 0
    %p166 = por %p164, %p165
    %s167 = ssub.s32 %s28, %s40
    %p168 = scmp.eq.s32.totalorder %s167, 0
    %s170 = sadd.s32 %s169, 1
    %s171 = scalar_select %p168, %s169, %s170
    %p174 = pneg %p168
    %p175 = scmp.eq.s32.totalorder %s21, 1
    %p176 = por %p174, %p175
    %p177 = scmp.ne.s32.totalorder %s169, %s172
    %p178 = scmp.eq.s32.totalorder %s21, 0
    %p179 = por %p177, %p178
    %p180 = scmp.ne.s32.totalorder %s169, %s172
    %p181 = scmp.eq.s32.totalorder %s26, 1
    %p182 = por %p180, %p181
    %p183 = scmp.ne.s32.totalorder %s172, %s173
    %p184 = scmp.eq.s32.totalorder %s26, 0
    %p185 = por %p183, %p184
    %p186 = scmp.ne.s32.totalorder %s172, %s173
    %p187 = scmp.eq.s32.totalorder %s27, 1
    %p188 = por %p186, %p187
    %p190 = scmp.ne.s32.totalorder %s173, %s189
    %p191 = scmp.eq.s32.totalorder %s27, 0
    %p192 = por %p190, %p191
    %p193 = scmp.le.s32.totalorder 1, %s21
    %p194 = scmp.lt.s32.totalorder %s21, 3
    %p195 = pnand %p193, %p194
    %p196 = pneg %p195
    // Predicated region
    $region9: #{gaz_bilstm_forward.1} parent=5 // pred_check
      _
    $region10: #{gaz_bilstm_forward.1} parent=5 // pred_check_branch
      %198 = sbr.rel (%p195) target = $region12
    $region11: #{gaz_bilstm_forward.1} parent=5 // pred_region
      %s199 = ssub.s32 %s21, 1
      // Predicated region
      $region13: #{gaz_bilstm_forward.1} parent=11 // pred_check
        %p200 = pneg %p110
      $region14: #{gaz_bilstm_forward.1} parent=11 // pred_check_branch
        %202 = sbr.rel (%p200) target = $region16
      $region15: #{gaz_bilstm_forward.1} parent=11 // pred_region
        _
      $region16: #{gaz_bilstm_forward.1} parent=11 // pred_fallthru
        _
      // Predicated region
      $region17: #{gaz_bilstm_forward.1} parent=11 // pred_check
        %p203 = pneg %p131
      $region18: #{gaz_bilstm_forward.1} parent=11 // pred_check_branch
        %205 = sbr.rel (%p203) target = $region20
      $region19: #{gaz_bilstm_forward.1} parent=11 // pred_region
        _
      $region20: #{gaz_bilstm_forward.1} parent=11 // pred_fallthru
        _
    $region12: #{gaz_bilstm_forward.1} parent=5 // pred_fallthru
      _
    %p206 = scmp.lt.s32.totalorder %s21, 2
    // Predicated region
    $region21: #{gaz_bilstm_forward.1} parent=5 // pred_check
      %p207 = pneg %p206
    $region22: #{gaz_bilstm_forward.1} parent=5 // pred_check_branch
      %209 = sbr.rel (%p207) target = $region24
    $region23: #{gaz_bilstm_forward.1} parent=5 // pred_region
      // Predicated region
      $region25: #{gaz_bilstm_forward.1} parent=23 // pred_check
        %p210 = pneg %p55
      $region26: #{gaz_bilstm_forward.1} parent=23 // pred_check_branch
        %212 = sbr.rel (%p210) target = $region28
      $region27: #{gaz_bilstm_forward.1} parent=23 // pred_region
        %s213 = smul.u32 4, %s29
        %p214 = scmp.lt.s32.totalorder %s213, 7
        %s215 = scalar_select %p214, %s213, 7
        %p216 = scmp.lt.s32.totalorder %s28, 0
        %s217 = scalar_select %p216, %s28, 0
        %s218 = sadd.s32 %s217, %s215
        %s219 = smul.addr %s218, 8
        %s220 = scalar_lea.vmem %s1, %s219
        %s221 = smul.u32 4, %s29
      $region28: #{gaz_bilstm_forward.1} parent=23 // pred_fallthru
        _
      // Predicated region
      $region29: #{gaz_bilstm_forward.1} parent=23 // pred_check
        %p222 = pneg %p83
      $region30: #{gaz_bilstm_forward.1} parent=23 // pred_check_branch
        %224 = sbr.rel (%p222) target = $region32
      $region31: #{gaz_bilstm_forward.1} parent=23 // pred_region
        %s225 = smul.u32 4, %s29
        %p226 = scmp.lt.s32.totalorder %s225, 7
        %s227 = scalar_select %p226, %s225, 7
        %p228 = scmp.lt.s32.totalorder %s28, 0
        %s229 = scalar_select %p228, %s28, 0
        %s230 = sadd.s32 %s229, %s227
        %s231 = smul.addr %s230, 8
        %s232 = scalar_lea.vmem %s2, %s231
        %s233 = smul.u32 4, %s29
      $region32: #{gaz_bilstm_forward.1} parent=23 // pred_fallthru
        _
    $region24: #{gaz_bilstm_forward.1} parent=5 // pred_fallthru
      _
    %p234 = scmp.le.s32.totalorder 1, %s21
    %p235 = scmp.lt.s32.totalorder %s21, 3
    %p236 = pnand %p234, %p235
    %p237 = pneg %p236
    // Predicated region
    $region33: #{gaz_bilstm_forward.1} parent=5 // pred_check
      _
    $region34: #{gaz_bilstm_forward.1} parent=5 // pred_check_branch
      %239 = sbr.rel (%p236) target = $region36
    $region35: #{gaz_bilstm_forward.1} parent=5 // pred_region
      %s240 = ssub.s32 %s21, 1
      %s241 = smul.u32 4, %s31
      %p242 = scmp.lt.s32.totalorder %s241, 7
      %s243 = scalar_select %p242, %s241, 7
      %p244 = scmp.lt.s32.totalorder %s30, 0
      %s245 = scalar_select %p244, %s30, 0
      %s246 = sadd.s32 %s245, %s243
      %s247 = smul.addr %s246, 8
      %s248 = scalar_lea.vmem %s1, %s247
      %p249 = pneg %p61
      %p250 = pneg %p58
      %s251 = smul.u32 4, %s31
      %p252 = scmp.lt.s32.totalorder %s251, 7
      %s253 = scalar_select %p252, %s251, 7
      %p254 = scmp.lt.s32.totalorder %s30, 0
      %s255 = scalar_select %p254, %s30, 0
      %s256 = sadd.s32 %s255, %s253
      %s257 = smul.addr %s256, 8
      %s258 = scalar_lea.vmem %s2, %s257
      %p259 = pneg %p89
      %p260 = pneg %p86
      %p261 = pneg %p110
      %p262 = pneg %p107
      %p263 = pneg %p131
      %p264 = pneg %p128
      %p265 = pneg %p159
      %p266 = pneg %p156
      %s267 = smul.u32 4, %s31
      %p268 = scmp.lt.s32.totalorder %s267, 7
      %s269 = scalar_select %p268, %s267, 7
      %p270 = scmp.lt.s32.totalorder %s30, 0
      %s271 = scalar_select %p270, %s30, 0
      %s272 = sadd.s32 %s271, %s269
      %s273 = smul.addr %s272, 8
      %s274 = scalar_lea.vmem %s5, %s273
      %p275 = pneg %p185
      %p276 = pneg %p182
      %p277 = scmp.lt.s32.totalorder %s30, 0
      %s278 = scalar_select %p277, %s30, 0
      %s279 = smul.addr %s278, 8
      %s280 = scalar_lea.vmem %s6, %s279
      %s281 = smul.u32 4, %s31
      %p282 = scmp.lt.s32.totalorder %s281, 7
      %s283 = scalar_select %p282, %s281, 7
      %p284 = scmp.lt.s32.totalorder %s30, 0
      %s285 = scalar_select %p284, %s30, 0
      %s286 = sadd.s32 %s285, %s283
      %s287 = smul.addr %s286, 8
      %s288 = scalar_lea.vmem %s1, %s287
      %s289 = smul.u32 4, %s31
      %s290 = smul.u32 4, %s31
      %p291 = scmp.lt.s32.totalorder %s290, 7
      %s292 = scalar_select %p291, %s290, 7
      %p293 = scmp.lt.s32.totalorder %s30, 0
      %s294 = scalar_select %p293, %s30, 0
      %s295 = sadd.s32 %s294, %s292
      %s296 = smul.addr %s295, 8
      %s297 = scalar_lea.vmem %s2, %s296
      %s298 = smul.u32 4, %s31
      %s299 = smul.u32 4, %s31
      %p300 = scmp.lt.s32.totalorder %s299, 7
      %s301 = scalar_select %p300, %s299, 7
      %p302 = scmp.lt.s32.totalorder %s30, 0
      %s303 = scalar_select %p302, %s30, 0
      %s304 = sadd.s32 %s303, %s301
      %s305 = smul.addr %s304, 8
      %s306 = scalar_lea.vmem %s5, %s305
      %s307 = smul.u32 4, %s31
      %p308 = scmp.lt.s32.totalorder %s30, 0
      %s309 = scalar_select %p308, %s30, 0
      %s310 = smul.addr %s309, 8
      %s311 = scalar_lea.vmem %s6, %s310
      %p312 = scmp.eq.s32.totalorder %s31, 0
      // Predicated region
      $region37: #{gaz_bilstm_forward.1} parent=35 // pred_check
        %p313 = pneg %p312
      $region38: #{gaz_bilstm_forward.1} parent=35 // pred_check_branch
        %315 = sbr.rel (%p313) target = $region40
      $region39: #{gaz_bilstm_forward.1} parent=35 // pred_region
        %vm316 = vcmask 261120
        %317 = vst.msk [vmem:[#allocation2] sm:$0xff] %vm316, 0.0
        %318 = vst.msk [vmem:[#allocation3] sm:$0xff] %vm316, 0.0
        %319 = vst.msk [vmem:[#allocation4] sm:$0xff] %vm316, 0.0
        %320 = vst.msk [vmem:[#allocation5] sm:$0xff] %vm316, 0.0
      $region40: #{gaz_bilstm_forward.1} parent=35 // pred_fallthru
        _
      %v321 = vld [vmem:[%s3] sm:$0xff]
      %v322 = vld [vmem:[%s3 + $0x8] sm:$0xff]
      %v323 = vld [vmem:[%s3 + $0x10] sm:$0xff]
      %v324 = vld [vmem:[%s3 + $0x18] sm:$0xff]
      %v325 = vld [vmem:[%s4] sm:$0xff]
      %v326 = vld [vmem:[%s4 + $0x8] sm:$0xff]
      %v327 = vld [vmem:[%s4 + $0x10] sm:$0xff]
      %v328 = vld [vmem:[%s4 + $0x18] sm:$0xff]
      %v329 = vld [vmem:[#allocation2] sm:$0xff]
      %v330 = vld [vmem:[#allocation3] sm:$0xff]
      %v331 = vld [vmem:[#allocation4] sm:$0xff]
      %v332 = vld [vmem:[#allocation5] sm:$0xff]
      %s333 = smul.u32 %s31, 4
      %v334 = vld [vmem:[%s288] sm:$0xff]
      %vm335 = vcmask 261120
      %v337 = vsel %vm335, %v329, 0
      %339 = vmatpush.msra.mxu0 0.0
      %340 = vmatpush.msra.mxu0 0.0
      %341 = vmatpush.msra.mxu0 0.0
      %342 = vmatpush.msra.mxu0 0.0
      %343 = vmatpush.msra.mxu0 0.0
      %344 = vmatpush.msra.mxu0 0.0
      %345 = vmatpush.msra.mxu0 0.0
      %346 = vmatpush.msra.mxu0 0.0
      %347 = vmatpush.msra.mxu0 0.0
      %348 = vmatpush.msra.mxu0 0.0
      %349 = vmatpush.msra.mxu0 0.0
      %350 = vmatpush.msra.mxu0 0.0
      %351 = vmatpush.msra.mxu0 %v324
      %352 = vmatpush.msra.mxu0 %v323
      %353 = vmatpush.msra.mxu0 %v322
      %354 = vmatpush.msra.mxu0 %v321
      %355 = vmatmul.f32.gmra.mxu0 %v337
      %v356 = vpop.f32.mrf.mxu0
      %v357 = vadd.f32 0.0, %v356
      %358 = vdwg.mxu0
      %v359 = vadd.f32 %v334, %v357
      %v360 = vmul.f32 %v359, 0.5
      %v361 = vtanh.pop %v360
      %v362 = vmul.f32 %v361, 0.5
      %v363 = vadd.f32 %v362, 0.5
      %v364 = vtanh.pop %v359
      %366 = vrot.lane.b32.xlu0 %v330, 32
      %v367 = vpop.permute.xlu0 %366
      %v369 = vmul.f32 %v363, %v367
      %371 = vrot.lane.b32.xlu0 %v364, 64
      %v372 = vpop.permute.xlu0 %371
      %v374 = vmul.f32 %v363, %v372
      %376 = vrot.lane.b32.xlu0 %v374, 32
      %v377 = vpop.permute.xlu0 %376
      %v379 = vadd.f32 %v369, %v377
      %v380 = vtanh.pop %v379
      %382 = vrot.lane.b32.xlu0 %v380, 64
      %v383 = vpop.permute.xlu0 %382
      %v385 = vmul.f32 %v363, %v383
      %v386 = vld [vmem:[%s297] sm:$0xff]
      %v388 = vsel %vm335, %v331, 0
      %390 = vmatpush.msra.mxu0 0.0
      %391 = vmatpush.msra.mxu0 0.0
      %392 = vmatpush.msra.mxu0 0.0
      %393 = vmatpush.msra.mxu0 0.0
      %394 = vmatpush.msra.mxu0 0.0
      %395 = vmatpush.msra.mxu0 0.0
      %396 = vmatpush.msra.mxu0 0.0
      %397 = vmatpush.msra.mxu0 0.0
      %398 = vmatpush.msra.mxu0 0.0
      %399 = vmatpush.msra.mxu0 0.0
      %400 = vmatpush.msra.mxu0 0.0
      %401 = vmatpush.msra.mxu0 0.0
      %402 = vmatpush.msra.mxu0 %v328
      %403 = vmatpush.msra.mxu0 %v327
      %404 = vmatpush.msra.mxu0 %v326
      %405 = vmatpush.msra.mxu0 %v325
      %406 = vmatmul.f32.gmra.mxu0 %v388
      %v407 = vpop.f32.mrf.mxu0
      %v408 = vadd.f32 0.0, %v407
      %409 = vdwg.mxu0
      %v410 = vadd.f32 %v386, %v408
      %v411 = vmul.f32 %v410, 0.5
      %v412 = vtanh.pop %v411
      %v413 = vmul.f32 %v412, 0.5
      %v414 = vadd.f32 %v413, 0.5
      %v415 = vtanh.pop %v410
      %417 = vrot.lane.b32.xlu0 %v332, 32
      %v418 = vpop.permute.xlu0 %417
      %v420 = vmul.f32 %v414, %v418
      %422 = vrot.lane.b32.xlu0 %v415, 64
      %v423 = vpop.permute.xlu0 %422
      %v425 = vmul.f32 %v414, %v423
      %427 = vrot.lane.b32.xlu0 %v425, 32
      %v428 = vpop.permute.xlu0 %427
      %v430 = vadd.f32 %v420, %v428
      %v431 = vtanh.pop %v430
      %433 = vrot.lane.b32.xlu0 %v431, 64
      %v434 = vpop.permute.xlu0 %433
      %v436 = vmul.f32 %v414, %v434
      %438 = vrot.lane.b32.xlu0 %v436, 32
      %v439 = vpop.permute.xlu0 %438
      %441 = vst.msk [vmem:[%s306] sm:$0xff] %vm335, %v439
      %443 = vrot.lane.b32.xlu0 %v385, 32
      %v444 = vpop.permute.xlu0 %443
      %s446 = smul.u32 %s333, 8
      %s447 = scalar_lea.vmem %s311, %s446
      %448 = vst.msk [vmem:[%s447] sm:$0xff] %vm335, %v444
      %s449 = smul.u32 %s30, 8
      %s450 = sshra.s32 %s333, 7
      %s451 = sand.u32 %s333, 127
      %s452 = sadd.s32 %s450, %s449
      %s453 = smul.u32 %s452, 128
      %s454 = sshra.s32 %s333, 7
      %s455 = sand.u32 %s333, 127
      %s456 = sadd.s32 %s453, %s455
      %s457 = sld [smem:[#allocation7 + %s456]]
      %458 = vrot.lane.b32.xlu0 %v436, 64
      %v459 = vpop.permute.xlu0 %458
      %s461 = smul.u32 %s457, 8
      %s462 = scalar_lea.vmem %s311, %s461
      %vm463 = vcmask 516352
      %464 = vst.msk [vmem:[%s462] sm:$0x1] %vm463, %v459
      %s465 = sadd.s32 %s449, 1
      %s466 = sadd.s32 %s450, %s465
      %s467 = smul.u32 %s466, 128
      %s468 = sadd.s32 %s467, %s455
      %s469 = sld [smem:[#allocation7 + %s468]]
      %s470 = smul.u32 %s469, 8
      %s471 = scalar_lea.vmem %s311, %s470
      %vm472 = vcmask 517377
      %473 = vst.msk [vmem:[%s471] sm:$0x2] %vm472, %v459
      %s474 = sadd.s32 %s449, 2
      %s475 = sadd.s32 %s450, %s474
      %s476 = smul.u32 %s475, 128
      %s477 = sadd.s32 %s476, %s455
      %s478 = sld [smem:[#allocation7 + %s477]]
      %s479 = smul.u32 %s478, 8
      %s480 = scalar_lea.vmem %s311, %s479
      %vm481 = vcmask 518402
      %482 = vst.msk [vmem:[%s480] sm:$0x4] %vm481, %v459
      %s483 = sadd.s32 %s449, 3
      %s484 = sadd.s32 %s450, %s483
      %s485 = smul.u32 %s484, 128
      %s486 = sadd.s32 %s485, %s455
      %s487 = sld [smem:[#allocation7 + %s486]]
      %s488 = smul.u32 %s487, 8
      %s489 = scalar_lea.vmem %s311, %s488
      %vm490 = vcmask 519427
      %491 = vst.msk [vmem:[%s489] sm:$0x8] %vm490, %v459
      %s492 = sadd.s32 %s449, 4
      %s493 = sadd.s32 %s450, %s492
      %s494 = smul.u32 %s493, 128
      %s495 = sadd.s32 %s494, %s455
      %s496 = sld [smem:[#allocation7 + %s495]]
      %s497 = smul.u32 %s496, 8
      %s498 = scalar_lea.vmem %s311, %s497
      %vm499 = vcmask 520452
      %500 = vst.msk [vmem:[%s498] sm:$0x10] %vm499, %v459
      %s501 = sadd.s32 %s449, 5
      %s502 = sadd.s32 %s450, %s501
      %s503 = smul.u32 %s502, 128
      %s504 = sadd.s32 %s503, %s455
      %s505 = sld [smem:[#allocation7 + %s504]]
      %s506 = smul.u32 %s505, 8
      %s507 = scalar_lea.vmem %s311, %s506
      %vm508 = vcmask 521477
      %509 = vst.msk [vmem:[%s507] sm:$0x20] %vm508, %v459
      %s510 = sadd.s32 %s449, 6
      %s511 = sadd.s32 %s450, %s510
      %s512 = smul.u32 %s511, 128
      %s513 = sadd.s32 %s512, %s455
      %s514 = sld [smem:[#allocation7 + %s513]]
      %s515 = smul.u32 %s514, 8
      %s516 = scalar_lea.vmem %s311, %s515
      %vm517 = vcmask 522502
      %518 = vst.msk [vmem:[%s516] sm:$0x40] %vm517, %v459
      %s519 = sadd.s32 %s449, 7
      %s520 = sadd.s32 %s450, %s519
      %s521 = smul.u32 %s520, 128
      %s522 = sadd.s32 %s521, %s455
      %s523 = sld [smem:[#allocation7 + %s522]]
      %s524 = smul.u32 %s523, 8
      %s525 = scalar_lea.vmem %s311, %s524
      %vm526 = vcmask 523527
      %527 = vst.msk [vmem:[%s525] sm:$0x80] %vm526, %v459
      %s528 = sadd.s32 %s333, 1
      %s529 = scalar_lea.vmem %s288, 8
      %v530 = vld [vmem:[%s529] sm:$0xff]
      %v531 = vsel %vm335, %v444, 0
      %533 = vmatpush.msra.mxu0 0.0
      %534 = vmatpush.msra.mxu0 0.0
      %535 = vmatpush.msra.mxu0 0.0
      %536 = vmatpush.msra.mxu0 0.0
      %537 = vmatpush.msra.mxu0 0.0
      %538 = vmatpush.msra.mxu0 0.0
      %539 = vmatpush.msra.mxu0 0.0
      %540 = vmatpush.msra.mxu0 0.0
      %541 = vmatpush.msra.mxu0 0.0
      %542 = vmatpush.msra.mxu0 0.0
      %543 = vmatpush.msra.mxu0 0.0
      %544 = vmatpush.msra.mxu0 0.0
      %545 = vmatpush.msra.mxu0 %v324
      %546 = vmatpush.msra.mxu0 %v323
      %547 = vmatpush.msra.mxu0 %v322
      %548 = vmatpush.msra.mxu0 %v321
      %549 = vmatmul.f32.gmra.mxu0 %v531
      %v550 = vpop.f32.mrf.mxu0
      %v551 = vadd.f32 0.0, %v550
      %552 = vdwg.mxu0
      %v553 = vadd.f32 %v530, %v551
      %v554 = vmul.f32 %v553, 0.5
      %v555 = vtanh.pop %v554
      %v556 = vmul.f32 %v555, 0.5
      %v557 = vadd.f32 %v556, 0.5
      %v558 = vtanh.pop %v553
      %v559 = vmul.f32 %v557, %v379
      %561 = vrot.lane.b32.xlu0 %v558, 64
      %v562 = vpop.permute.xlu0 %561
      %v564 = vmul.f32 %v557, %v562
      %566 = vrot.lane.b32.xlu0 %v564, 32
      %v567 = vpop.permute.xlu0 %566
      %v569 = vadd.f32 %v559, %v567
      %v570 = vtanh.pop %v569
      %572 = vrot.lane.b32.xlu0 %v570, 64
      %v573 = vpop.permute.xlu0 %572
      %v575 = vmul.f32 %v557, %v573
      %s576 = scalar_lea.vmem %s297, 8
      %v577 = vld [vmem:[%s576] sm:$0xff]
      %v578 = vsel %vm335, %v439, 0
      %580 = vmatpush.msra.mxu0 0.0
      %581 = vmatpush.msra.mxu0 0.0
      %582 = vmatpush.msra.mxu0 0.0
      %583 = vmatpush.msra.mxu0 0.0
      %584 = vmatpush.msra.mxu0 0.0
      %585 = vmatpush.msra.mxu0 0.0
      %586 = vmatpush.msra.mxu0 0.0
      %587 = vmatpush.msra.mxu0 0.0
      %588 = vmatpush.msra.mxu0 0.0
      %589 = vmatpush.msra.mxu0 0.0
      %590 = vmatpush.msra.mxu0 0.0
      %591 = vmatpush.msra.mxu0 0.0
      %592 = vmatpush.msra.mxu0 %v328
      %593 = vmatpush.msra.mxu0 %v327
      %594 = vmatpush.msra.mxu0 %v326
      %595 = vmatpush.msra.mxu0 %v325
      %596 = vmatmul.f32.gmra.mxu0 %v578
      %v597 = vpop.f32.mrf.mxu0
      %v598 = vadd.f32 0.0, %v597
      %599 = vdwg.mxu0
      %v600 = vadd.f32 %v577, %v598
      %v601 = vmul.f32 %v600, 0.5
      %v602 = vtanh.pop %v601
      %v603 = vmul.f32 %v602, 0.5
      %v604 = vadd.f32 %v603, 0.5
      %v605 = vtanh.pop %v600
      %v606 = vmul.f32 %v604, %v430
      %608 = vrot.lane.b32.xlu0 %v605, 64
      %v609 = vpop.permute.xlu0 %608
      %v611 = vmul.f32 %v604, %v609
      %613 = vrot.lane.b32.xlu0 %v611, 32
      %v614 = vpop.permute.xlu0 %613
      %v616 = vadd.f32 %v606, %v614
      %v617 = vtanh.pop %v616
      %619 = vrot.lane.b32.xlu0 %v617, 64
      %v620 = vpop.permute.xlu0 %619
      %v622 = vmul.f32 %v604, %v620
      %624 = vrot.lane.b32.xlu0 %v622, 32
      %v625 = vpop.permute.xlu0 %624
      %s627 = scalar_lea.vmem %s306, 8
      %628 = vst.msk [vmem:[%s627] sm:$0xff] %vm335, %v625
      %630 = vrot.lane.b32.xlu0 %v575, 32
      %v631 = vpop.permute.xlu0 %630
      %s633 = smul.u32 %s528, 8
      %s634 = scalar_lea.vmem %s311, %s633
      %635 = vst.msk [vmem:[%s634] sm:$0xff] %vm335, %v631
      %s636 = sshra.s32 %s528, 7
      %s637 = sand.u32 %s528, 127
      %s638 = sadd.s32 %s636, %s449
      %s639 = smul.u32 %s638, 128
      %s640 = sshra.s32 %s528, 7
      %s641 = sand.u32 %s528, 127
      %s642 = sadd.s32 %s639, %s641
      %s643 = sld [smem:[#allocation7 + %s642]]
      %644 = vrot.lane.b32.xlu0 %v622, 64
      %v645 = vpop.permute.xlu0 %644
      %s647 = smul.u32 %s643, 8
      %s648 = scalar_lea.vmem %s311, %s647
      %649 = vst.msk [vmem:[%s648] sm:$0x1] %vm463, %v645
      %s650 = sadd.s32 %s636, %s465
      %s651 = smul.u32 %s650, 128
      %s652 = sadd.s32 %s651, %s641
      %s653 = sld [smem:[#allocation7 + %s652]]
      %s654 = smul.u32 %s653, 8
      %s655 = scalar_lea.vmem %s311, %s654
      %656 = vst.msk [vmem:[%s655] sm:$0x2] %vm472, %v645
      %s657 = sadd.s32 %s636, %s474
      %s658 = smul.u32 %s657, 128
      %s659 = sadd.s32 %s658, %s641
      %s660 = sld [smem:[#allocation7 + %s659]]
      %s661 = smul.u32 %s660, 8
      %s662 = scalar_lea.vmem %s311, %s661
      %663 = vst.msk [vmem:[%s662] sm:$0x4] %vm481, %v645
      %s664 = sadd.s32 %s636, %s483
      %s665 = smul.u32 %s664, 128
      %s666 = sadd.s32 %s665, %s641
      %s667 = sld [smem:[#allocation7 + %s666]]
      %s668 = smul.u32 %s667, 8
      %s669 = scalar_lea.vmem %s311, %s668
      %670 = vst.msk [vmem:[%s669] sm:$0x8] %vm490, %v645
      %s671 = sadd.s32 %s636, %s492
      %s672 = smul.u32 %s671, 128
      %s673 = sadd.s32 %s672, %s641
      %s674 = sld [smem:[#allocation7 + %s673]]
      %s675 = smul.u32 %s674, 8
      %s676 = scalar_lea.vmem %s311, %s675
      %677 = vst.msk [vmem:[%s676] sm:$0x10] %vm499, %v645
      %s678 = sadd.s32 %s636, %s501
      %s679 = smul.u32 %s678, 128
      %s680 = sadd.s32 %s679, %s641
      %s681 = sld [smem:[#allocation7 + %s680]]
      %s682 = smul.u32 %s681, 8
      %s683 = scalar_lea.vmem %s311, %s682
      %684 = vst.msk [vmem:[%s683] sm:$0x20] %vm508, %v645
      %s685 = sadd.s32 %s636, %s510
      %s686 = smul.u32 %s685, 128
      %s687 = sadd.s32 %s686, %s641
      %s688 = sld [smem:[#allocation7 + %s687]]
      %s689 = smul.u32 %s688, 8
      %s690 = scalar_lea.vmem %s311, %s689
      %691 = vst.msk [vmem:[%s690] sm:$0x40] %vm517, %v645
      %s692 = sadd.s32 %s636, %s519
      %s693 = smul.u32 %s692, 128
      %s694 = sadd.s32 %s693, %s641
      %s695 = sld [smem:[#allocation7 + %s694]]
      %s696 = smul.u32 %s695, 8
      %s697 = scalar_lea.vmem %s311, %s696
      %698 = vst.msk [vmem:[%s697] sm:$0x80] %vm526, %v645
      %s699 = sadd.s32 %s333, 2
      %s700 = scalar_lea.vmem %s288, 16
      %v701 = vld [vmem:[%s700] sm:$0xff]
      %v702 = vsel %vm335, %v631, 0
      %704 = vmatpush.msra.mxu0 0.0
      %705 = vmatpush.msra.mxu0 0.0
      %706 = vmatpush.msra.mxu0 0.0
      %707 = vmatpush.msra.mxu0 0.0
      %708 = vmatpush.msra.mxu0 0.0
      %709 = vmatpush.msra.mxu0 0.0
      %710 = vmatpush.msra.mxu0 0.0
      %711 = vmatpush.msra.mxu0 0.0
      %712 = vmatpush.msra.mxu0 0.0
      %713 = vmatpush.msra.mxu0 0.0
      %714 = vmatpush.msra.mxu0 0.0
      %715 = vmatpush.msra.mxu0 0.0
      %716 = vmatpush.msra.mxu0 %v324
      %717 = vmatpush.msra.mxu0 %v323
      %718 = vmatpush.msra.mxu0 %v322
      %719 = vmatpush.msra.mxu0 %v321
      %720 = vmatmul.f32.gmra.mxu0 %v702
      %v721 = vpop.f32.mrf.mxu0
      %v722 = vadd.f32 0.0, %v721
      %723 = vdwg.mxu0
      %v724 = vadd.f32 %v701, %v722
      %v725 = vmul.f32 %v724, 0.5
      %v726 = vtanh.pop %v725
      %v727 = vmul.f32 %v726, 0.5
      %v728 = vadd.f32 %v727, 0.5
      %v729 = vtanh.pop %v724
      %v730 = vmul.f32 %v728, %v569
      %732 = vrot.lane.b32.xlu0 %v729, 64
      %v733 = vpop.permute.xlu0 %732
      %v735 = vmul.f32 %v728, %v733
      %737 = vrot.lane.b32.xlu0 %v735, 32
      %v738 = vpop.permute.xlu0 %737
      %v740 = vadd.f32 %v730, %v738
      %v741 = vtanh.pop %v740
      %743 = vrot.lane.b32.xlu0 %v741, 64
      %v744 = vpop.permute.xlu0 %743
      %v746 = vmul.f32 %v728, %v744
      %s747 = scalar_lea.vmem %s297, 16
      %v748 = vld [vmem:[%s747] sm:$0xff]
      %v749 = vsel %vm335, %v625, 0
      %751 = vmatpush.msra.mxu0 0.0
      %752 = vmatpush.msra.mxu0 0.0
      %753 = vmatpush.msra.mxu0 0.0
      %754 = vmatpush.msra.mxu0 0.0
      %755 = vmatpush.msra.mxu0 0.0
      %756 = vmatpush.msra.mxu0 0.0
      %757 = vmatpush.msra.mxu0 0.0
      %758 = vmatpush.msra.mxu0 0.0
      %759 = vmatpush.msra.mxu0 0.0
      %760 = vmatpush.msra.mxu0 0.0
      %761 = vmatpush.msra.mxu0 0.0
      %762 = vmatpush.msra.mxu0 0.0
      %763 = vmatpush.msra.mxu0 %v328
      %764 = vmatpush.msra.mxu0 %v327
      %765 = vmatpush.msra.mxu0 %v326
      %766 = vmatpush.msra.mxu0 %v325
      %767 = vmatmul.f32.gmra.mxu0 %v749
      %v768 = vpop.f32.mrf.mxu0
      %v769 = vadd.f32 0.0, %v768
      %770 = vdwg.mxu0
      %v771 = vadd.f32 %v748, %v769
      %v772 = vmul.f32 %v771, 0.5
      %v773 = vtanh.pop %v772
      %v774 = vmul.f32 %v773, 0.5
      %v775 = vadd.f32 %v774, 0.5
      %v776 = vtanh.pop %v771
      %v777 = vmul.f32 %v775, %v616
      %779 = vrot.lane.b32.xlu0 %v776, 64
      %v780 = vpop.permute.xlu0 %779
      %v782 = vmul.f32 %v775, %v780
      %784 = vrot.lane.b32.xlu0 %v782, 32
      %v785 = vpop.permute.xlu0 %784
      %v787 = vadd.f32 %v777, %v785
      %v788 = vtanh.pop %v787
      %790 = vrot.lane.b32.xlu0 %v788, 64
      %v791 = vpop.permute.xlu0 %790
      %v793 = vmul.f32 %v775, %v791
      %795 = vrot.lane.b32.xlu0 %v793, 32
      %v796 = vpop.permute.xlu0 %795
      %s798 = scalar_lea.vmem %s306, 16
      %799 = vst.msk [vmem:[%s798] sm:$0xff] %vm335, %v796
      %801 = vrot.lane.b32.xlu0 %v746, 32
      %v802 = vpop.permute.xlu0 %801
      %s804 = smul.u32 %s699, 8
      %s805 = scalar_lea.vmem %s311, %s804
      %806 = vst.msk [vmem:[%s805] sm:$0xff] %vm335, %v802
      %s807 = sshra.s32 %s699, 7
      %s808 = sand.u32 %s699, 127
      %s809 = sadd.s32 %s807, %s449
      %s810 = smul.u32 %s809, 128
      %s811 = sshra.s32 %s699, 7
      %s812 = sand.u32 %s699, 127
      %s813 = sadd.s32 %s810, %s812
      %s814 = sld [smem:[#allocation7 + %s813]]
      %815 = vrot.lane.b32.xlu0 %v793, 64
      %v816 = vpop.permute.xlu0 %815
      %s818 = smul.u32 %s814, 8
      %s819 = scalar_lea.vmem %s311, %s818
      %820 = vst.msk [vmem:[%s819] sm:$0x1] %vm463, %v816
      %s821 = sadd.s32 %s807, %s465
      %s822 = smul.u32 %s821, 128
      %s823 = sadd.s32 %s822, %s812
      %s824 = sld [smem:[#allocation7 + %s823]]
      %s825 = smul.u32 %s824, 8
      %s826 = scalar_lea.vmem %s311, %s825
      %827 = vst.msk [vmem:[%s826] sm:$0x2] %vm472, %v816
      %s828 = sadd.s32 %s807, %s474
      %s829 = smul.u32 %s828, 128
      %s830 = sadd.s32 %s829, %s812
      %s831 = sld [smem:[#allocation7 + %s830]]
      %s832 = smul.u32 %s831, 8
      %s833 = scalar_lea.vmem %s311, %s832
      %834 = vst.msk [vmem:[%s833] sm:$0x4] %vm481, %v816
      %s835 = sadd.s32 %s807, %s483
      %s836 = smul.u32 %s835, 128
      %s837 = sadd.s32 %s836, %s812
      %s838 = sld [smem:[#allocation7 + %s837]]
      %s839 = smul.u32 %s838, 8
      %s840 = scalar_lea.vmem %s311, %s839
      %841 = vst.msk [vmem:[%s840] sm:$0x8] %vm490, %v816
      %s842 = sadd.s32 %s807, %s492
      %s843 = smul.u32 %s842, 128
      %s844 = sadd.s32 %s843, %s812
      %s845 = sld [smem:[#allocation7 + %s844]]
      %s846 = smul.u32 %s845, 8
      %s847 = scalar_lea.vmem %s311, %s846
      %848 = vst.msk [vmem:[%s847] sm:$0x10] %vm499, %v816
      %s849 = sadd.s32 %s807, %s501
      %s850 = smul.u32 %s849, 128
      %s851 = sadd.s32 %s850, %s812
      %s852 = sld [smem:[#allocation7 + %s851]]
      %s853 = smul.u32 %s852, 8
      %s854 = scalar_lea.vmem %s311, %s853
      %855 = vst.msk [vmem:[%s854] sm:$0x20] %vm508, %v816
      %s856 = sadd.s32 %s807, %s510
      %s857 = smul.u32 %s856, 128
      %s858 = sadd.s32 %s857, %s812
      %s859 = sld [smem:[#allocation7 + %s858]]
      %s860 = smul.u32 %s859, 8
      %s861 = scalar_lea.vmem %s311, %s860
      %862 = vst.msk [vmem:[%s861] sm:$0x40] %vm517, %v816
      %s863 = sadd.s32 %s807, %s519
      %s864 = smul.u32 %s863, 128
      %s865 = sadd.s32 %s864, %s812
      %s866 = sld [smem:[#allocation7 + %s865]]
      %s867 = smul.u32 %s866, 8
      %s868 = scalar_lea.vmem %s311, %s867
      %869 = vst.msk [vmem:[%s868] sm:$0x80] %vm526, %v816
      %s870 = sadd.s32 %s333, 3
      %s871 = scalar_lea.vmem %s288, 24
      %v872 = vld [vmem:[%s871] sm:$0xff]
      %v873 = vsel %vm335, %v802, 0
      %875 = vmatpush.msra.mxu0 0.0
      %876 = vmatpush.msra.mxu0 0.0
      %877 = vmatpush.msra.mxu0 0.0
      %878 = vmatpush.msra.mxu0 0.0
      %879 = vmatpush.msra.mxu0 0.0
      %880 = vmatpush.msra.mxu0 0.0
      %881 = vmatpush.msra.mxu0 0.0
      %882 = vmatpush.msra.mxu0 0.0
      %883 = vmatpush.msra.mxu0 0.0
      %884 = vmatpush.msra.mxu0 0.0
      %885 = vmatpush.msra.mxu0 0.0
      %886 = vmatpush.msra.mxu0 0.0
      %887 = vmatpush.msra.mxu0 %v324
      %888 = vmatpush.msra.mxu0 %v323
      %889 = vmatpush.msra.mxu0 %v322
      %890 = vmatpush.msra.mxu0 %v321
      %891 = vmatmul.f32.gmra.mxu0 %v873
      %v892 = vpop.f32.mrf.mxu0
      %v893 = vadd.f32 0.0, %v892
      %894 = vdwg.mxu0
      %v895 = vadd.f32 %v872, %v893
      %v896 = vmul.f32 %v895, 0.5
      %v897 = vtanh.pop %v896
      %v898 = vmul.f32 %v897, 0.5
      %v899 = vadd.f32 %v898, 0.5
      %v900 = vtanh.pop %v895
      %v901 = vmul.f32 %v899, %v740
      %903 = vrot.lane.b32.xlu0 %v900, 64
      %v904 = vpop.permute.xlu0 %903
      %v906 = vmul.f32 %v899, %v904
      %908 = vrot.lane.b32.xlu0 %v906, 32
      %v909 = vpop.permute.xlu0 %908
      %v911 = vadd.f32 %v901, %v909
      %v912 = vtanh.pop %v911
      %914 = vrot.lane.b32.xlu0 %v912, 64
      %v915 = vpop.permute.xlu0 %914
      %v917 = vmul.f32 %v899, %v915
      %s918 = scalar_lea.vmem %s297, 24
      %v919 = vld [vmem:[%s918] sm:$0xff]
      %v920 = vsel %vm335, %v796, 0
      %922 = vmatpush.msra.mxu0 0.0
      %923 = vmatpush.msra.mxu0 0.0
      %924 = vmatpush.msra.mxu0 0.0
      %925 = vmatpush.msra.mxu0 0.0
      %926 = vmatpush.msra.mxu0 0.0
      %927 = vmatpush.msra.mxu0 0.0
      %928 = vmatpush.msra.mxu0 0.0
      %929 = vmatpush.msra.mxu0 0.0
      %930 = vmatpush.msra.mxu0 0.0
      %931 = vmatpush.msra.mxu0 0.0
      %932 = vmatpush.msra.mxu0 0.0
      %933 = vmatpush.msra.mxu0 0.0
      %934 = vmatpush.msra.mxu0 %v328
      %935 = vmatpush.msra.mxu0 %v327
      %936 = vmatpush.msra.mxu0 %v326
      %937 = vmatpush.msra.mxu0 %v325
      %938 = vmatmul.f32.gmra.mxu0 %v920
      %v939 = vpop.f32.mrf.mxu0
      %v940 = vadd.f32 0.0, %v939
      %941 = vdwg.mxu0
      %v942 = vadd.f32 %v919, %v940
      %v943 = vmul.f32 %v942, 0.5
      %v944 = vtanh.pop %v943
      %v945 = vmul.f32 %v944, 0.5
      %v946 = vadd.f32 %v945, 0.5
      %v947 = vtanh.pop %v942
      %v948 = vmul.f32 %v946, %v787
      %950 = vrot.lane.b32.xlu0 %v947, 64
      %v951 = vpop.permute.xlu0 %950
      %v953 = vmul.f32 %v946, %v951
      %955 = vrot.lane.b32.xlu0 %v953, 32
      %v956 = vpop.permute.xlu0 %955
      %v958 = vadd.f32 %v948, %v956
      %v959 = vtanh.pop %v958
      %961 = vrot.lane.b32.xlu0 %v959, 64
      %v962 = vpop.permute.xlu0 %961
      %v964 = vmul.f32 %v946, %v962
      %966 = vrot.lane.b32.xlu0 %v964, 32
      %v967 = vpop.permute.xlu0 %966
      %s969 = scalar_lea.vmem %s306, 24
      %970 = vst.msk [vmem:[%s969] sm:$0xff] %vm335, %v967
      %972 = vrot.lane.b32.xlu0 %v917, 32
      %v973 = vpop.permute.xlu0 %972
      %s975 = smul.u32 %s870, 8
      %s976 = scalar_lea.vmem %s311, %s975
      %977 = vst.msk [vmem:[%s976] sm:$0xff] %vm335, %v973
      %s978 = sshra.s32 %s870, 7
      %s979 = sand.u32 %s870, 127
      %s980 = sadd.s32 %s978, %s449
      %s981 = smul.u32 %s980, 128
      %s982 = sshra.s32 %s870, 7
      %s983 = sand.u32 %s870, 127
      %s984 = sadd.s32 %s981, %s983
      %s985 = sld [smem:[#allocation7 + %s984]]
      %986 = vrot.lane.b32.xlu0 %v964, 64
      %v987 = vpop.permute.xlu0 %986
      %s989 = smul.u32 %s985, 8
      %s990 = scalar_lea.vmem %s311, %s989
      %991 = vst.msk [vmem:[%s990] sm:$0x1] %vm463, %v987
      %s992 = sadd.s32 %s978, %s465
      %s993 = smul.u32 %s992, 128
      %s994 = sadd.s32 %s993, %s983
      %s995 = sld [smem:[#allocation7 + %s994]]
      %s996 = smul.u32 %s995, 8
      %s997 = scalar_lea.vmem %s311, %s996
      %998 = vst.msk [vmem:[%s997] sm:$0x2] %vm472, %v987
      %s999 = sadd.s32 %s978, %s474
      %s1000 = smul.u32 %s999, 128
      %s1001 = sadd.s32 %s1000, %s983
      %s1002 = sld [smem:[#allocation7 + %s1001]]
      %s1003 = smul.u32 %s1002, 8
      %s1004 = scalar_lea.vmem %s311, %s1003
      %1005 = vst.msk [vmem:[%s1004] sm:$0x4] %vm481, %v987
      %s1006 = sadd.s32 %s978, %s483
      %s1007 = smul.u32 %s1006, 128
      %s1008 = sadd.s32 %s1007, %s983
      %s1009 = sld [smem:[#allocation7 + %s1008]]
      %s1010 = smul.u32 %s1009, 8
      %s1011 = scalar_lea.vmem %s311, %s1010
      %1012 = vst.msk [vmem:[%s1011] sm:$0x8] %vm490, %v987
      %s1013 = sadd.s32 %s978, %s492
      %s1014 = smul.u32 %s1013, 128
      %s1015 = sadd.s32 %s1014, %s983
      %s1016 = sld [smem:[#allocation7 + %s1015]]
      %s1017 = smul.u32 %s1016, 8
      %s1018 = scalar_lea.vmem %s311, %s1017
      %1019 = vst.msk [vmem:[%s1018] sm:$0x10] %vm499, %v987
      %s1020 = sadd.s32 %s978, %s501
      %s1021 = smul.u32 %s1020, 128
      %s1022 = sadd.s32 %s1021, %s983
      %s1023 = sld [smem:[#allocation7 + %s1022]]
      %s1024 = smul.u32 %s1023, 8
      %s1025 = scalar_lea.vmem %s311, %s1024
      %1026 = vst.msk [vmem:[%s1025] sm:$0x20] %vm508, %v987
      %s1027 = sadd.s32 %s978, %s510
      %s1028 = smul.u32 %s1027, 128
      %s1029 = sadd.s32 %s1028, %s983
      %s1030 = sld [smem:[#allocation7 + %s1029]]
      %s1031 = smul.u32 %s1030, 8
      %s1032 = scalar_lea.vmem %s311, %s1031
      %1033 = vst.msk [vmem:[%s1032] sm:$0x40] %vm517, %v987
      %s1034 = sadd.s32 %s978, %s519
      %s1035 = smul.u32 %s1034, 128
      %s1036 = sadd.s32 %s1035, %s983
      %s1037 = sld [smem:[#allocation7 + %s1036]]
      %s1038 = smul.u32 %s1037, 8
      %s1039 = scalar_lea.vmem %s311, %s1038
      %1040 = vst.msk [vmem:[%s1039] sm:$0x80] %vm526, %v987
      %1041 = vst.msk [vmem:[#allocation2] sm:$0xff] %vm335, %v973
      %1043 = vrot.lane.b32.xlu0 %v911, 96
      %v1044 = vpop.permute.xlu0 %1043
      %1046 = vst.msk [vmem:[#allocation3] sm:$0xff] %vm335, %v1044
      %1047 = vst.msk [vmem:[#allocation4] sm:$0xff] %vm335, %v967
      %1049 = vrot.lane.b32.xlu0 %v958, 96
      %v1050 = vpop.permute.xlu0 %1049
      %1052 = vst.msk [vmem:[#allocation5] sm:$0xff] %vm335, %v1050
      %s1053 = smul.u32 4, %s31
      %p1054 = scmp.lt.s32.totalorder %s1053, 7
      %s1055 = scalar_select %p1054, %s1053, 7
      %p1056 = scmp.lt.s32.totalorder %s30, 0
      %s1057 = scalar_select %p1056, %s30, 0
      %s1058 = sadd.s32 %s1057, %s1055
      %s1059 = smul.addr %s1058, 8
      %s1060 = scalar_lea.vmem %s5, %s1059
      %p1061 = scmp.lt.s32.totalorder %s30, 0
      %s1062 = scalar_select %p1061, %s30, 0
      %s1063 = smul.addr %s1062, 8
      %s1064 = scalar_lea.vmem %s6, %s1063
      // Predicated region
      $region41: #{gaz_bilstm_forward.1} parent=35 // pred_check
        %p1065 = pneg %p156
      $region42: #{gaz_bilstm_forward.1} parent=35 // pred_check_branch
        %1067 = sbr.rel (%p1065) target = $region44
      $region43: #{gaz_bilstm_forward.1} parent=35 // pred_region
        %s1068 = smul.u32 4, %s31
      $region44: #{gaz_bilstm_forward.1} parent=35 // pred_fallthru
        _
      // Predicated region
      $region45: #{gaz_bilstm_forward.1} parent=35 // pred_check
        %p1069 = pneg %p182
      $region46: #{gaz_bilstm_forward.1} parent=35 // pred_check_branch
        %1071 = sbr.rel (%p1069) target = $region48
      $region47: #{gaz_bilstm_forward.1} parent=35 // pred_region
        _
      $region48: #{gaz_bilstm_forward.1} parent=35 // pred_fallthru
        _
      // Predicated region
      $region49: #{gaz_bilstm_forward.1} parent=35 // pred_check
        %p1072 = pneg %p182
      $region50: #{gaz_bilstm_forward.1} parent=35 // pred_check_branch
        %1074 = sbr.rel (%p1072) target = $region52
      $region51: #{gaz_bilstm_forward.1} parent=35 // pred_region
        %p1075 = scmp.lt.s32.totalorder %s30, 0
        %s1076 = scalar_select %p1075, %s30, 0
        %s1077 = smul.addr %s1076, 8
        %s1078 = scalar_lea.vmem %s6, %s1077
      $region52: #{gaz_bilstm_forward.1} parent=35 // pred_fallthru
        _
    $region36: #{gaz_bilstm_forward.1} parent=5 // pred_fallthru
      _
    %p1079 = scmp.le.s32.totalorder 2, %s21
    // Predicated region
    $region53: #{gaz_bilstm_forward.1} parent=5 // pred_check
      %p1080 = pneg %p1079
    $region54: #{gaz_bilstm_forward.1} parent=5 // pred_check_branch
      %1082 = sbr.rel (%p1080) target = $region56
    $region55: #{gaz_bilstm_forward.1} parent=5 // pred_region
      %s1083 = ssub.s32 %s21, 2
      // Predicated region
      $region57: #{gaz_bilstm_forward.1} parent=55 // pred_check
        %p1084 = pneg %p162
      $region58: #{gaz_bilstm_forward.1} parent=55 // pred_check_branch
        %1086 = sbr.rel (%p1084) target = $region60
      $region59: #{gaz_bilstm_forward.1} parent=55 // pred_region
        %s1087 = smul.u32 4, %s33
        %p1088 = scmp.lt.s32.totalorder %s1087, 7
        %s1089 = scalar_select %p1088, %s1087, 7
        %p1090 = scmp.lt.s32.totalorder %s32, 0
        %s1091 = scalar_select %p1090, %s32, 0
        %s1092 = sadd.s32 %s1091, %s1089
        %s1093 = smul.addr %s1092, 8
        %s1094 = scalar_lea.vmem %s5, %s1093
      $region60: #{gaz_bilstm_forward.1} parent=55 // pred_fallthru
        _
    $region56: #{gaz_bilstm_forward.1} parent=5 // pred_fallthru
      _
  $region6: #{gaz_bilstm_forward.1} parent=0 // loop_footer
    %s25 = sadd.s32 1, %s21
  $region7: #{gaz_bilstm_forward.1} parent=0 // loop_footer_branch
    %20 = sbr.rel target = $region3
  $region8: #{gaz_bilstm_forward.1} parent=0 // loop_exit
    _

</llo_original>
